<compile_context>
chip_gen: v6e
topology: v6e:2x2x1
jax: 0.10.0
libtpu: 0.0.40
codegen_flags: <defaults>
</compile_context>

<pallas_src>
import jax
import jax.numpy as jnp
from jax import lax
from jax.experimental import pallas as pl
from jax.experimental.pallas import tpu as pltpu

POOL = 3  # nn.MaxPool2d(3)


def _make_kernel(Bt, C_in, K1, C1P, L1, L1P, K2, C2, L2, K3, L3):
    KP = Bt * L1 - 2  # columns of the 3-tap sliding max

    def kernel(x2_ref, w1_ref, bn1_ref, w2_ref, w3_ref, bn23_ref, sel_ref, o_ref):
        # ---- Conv1d #1 (kernel 13, stride 2, bias=False) + BN1: one matmul ----
        # stride-2 handled by the wrapper's even/odd split (x2[:,0]=even, x2[:,1]=odd);
        # im2col patches stacked along sublanes, batches concatenated along lanes.
        parts = []
        for bi in range(Bt):
            taps = []
            for k in range(K1):
                h, par = k // 2, k % 2
                taps.append(x2_ref[bi, par, :, pl.ds(h, L1)])           # (C_in, L1)
            parts.append(jnp.concatenate(taps, axis=0))                 # (K1*C_in, L1)
        p1 = jnp.concatenate(parts, axis=1)                             # (K1*C_in, Bt*L1)
        y1 = jnp.dot(w1_ref[...], p1, preferred_element_type=jnp.float32)
        y1 = y1 * bn1_ref[:, 0:1] + bn1_ref[:, 1:2]                     # (3*C1P, Bt*L1)

        # ---- MaxPool2d(3) over (channel, length), floor mode, in registers ----
        # Channels: wrapper permuted conv1 rows so pool member r of output channel p
        # sits at row r*C1P + p  ->  three contiguous row blocks.
        cm = jnp.maximum(jnp.maximum(y1[0:C1P], y1[C1P:2 * C1P]),
                         y1[2 * C1P:3 * C1P])                           # (C1P, Bt*L1)
        # Length: 3-tap sliding max (contiguous shifted slices), then the stride-3 /
        # per-batch column pick folded into a single matmul with a 0/1 matrix.
        sm = jnp.maximum(jnp.maximum(cm[:, 0:KP], cm[:, 1:KP + 1]),
                         cm[:, 2:KP + 2])                               # (C1P, KP)
        pooled = jnp.dot(sm, sel_ref[...], preferred_element_type=jnp.float32)
        pooled_t = pooled.T                                             # (Bt*L1P, C1P)

        # ---- Conv1d #2 (kernel 7, stride 1, bias=False) + BN2: one matmul ----
        parts = []
        for bi in range(Bt):
            off = bi * L1P
            taps = [pooled_t[off + k:off + k + L2, :] for k in range(K2)]
            parts.append(jnp.concatenate(taps, axis=1))                 # (L2, K2*C1P)
        p2 = jnp.concatenate(parts, axis=0)                             # (Bt*L2, K2*C1P)
        y2 = jnp.dot(p2, w2_ref[...], preferred_element_type=jnp.float32)
        y2 = y2 * bn23_ref[0:1, :] + bn23_ref[1:2, :]                   # (Bt*L2, C2)

        # ---- Conv1d #3 (kernel 5, stride 1, bias=False) + BN3: one matmul ----
        parts = []
        for bi in range(Bt):
            off = bi * L2
            taps = [y2[off + k:off + k + L3, :] for k in range(K3)]
            parts.append(jnp.concatenate(taps, axis=1))                 # (L3, K3*C2)
        p3 = jnp.concatenate(parts, axis=0)                             # (Bt*L3, K3*C2)
        y3 = jnp.dot(p3, w3_ref[...], preferred_element_type=jnp.float32)
        y3 = y3 * bn23_ref[2:3, :] + bn23_ref[3:4, :]                   # (Bt*L3, C2)

        # ---- Lane-dense writeback: one (L3, Bt*C2) slab, lanes = Bt*C2 (mult of 128)
        yt = jnp.concatenate([y3[bi * L3:(bi + 1) * L3, :] for bi in range(Bt)],
                             axis=1)                                    # (L3, Bt*C2)
        o_ref[...] = yt.astype(o_ref.dtype)

    return kernel


def three_layer_conv1d_unit(x, params, num_batch_tiles=2):
    """x: (B, C_in, L) float32. Returns (B, 2*hidden, L3) float32 (NCL)."""
    w1, s1, b1, w2, s2, b2, w3, s3, b3 = params
    B, C_in, L = x.shape
    H1, _, K1 = w1.shape
    C2, C1P, K2 = w2.shape
    _, _, K3 = w3.shape

    L1 = (L - K1) // 2 + 1
    assert C1P == H1 // POOL
    L1P = L1 // POOL
    L2 = L1P - K2 + 1
    L3 = L2 - K3 + 1
    assert L2 >= 1 and L3 >= 1

    G = num_batch_tiles if (B % num_batch_tiles == 0) else 1   # >=2 steps keeps both v7x TCs busy
    Bt = B // G

    # --- wrapper glue: even/odd split (stride-2), weight/BN re-layout ---
    LH = (L + 1) // 2
    xe = x[:, :, 0::2]
    xo = x[:, :, 1::2]
    if xo.shape[-1] < LH:
        xo = jnp.pad(xo, ((0, 0), (0, 0), (0, LH - xo.shape[-1])))
    x2 = jnp.stack([xe, xo], axis=1)                           # (B, 2, C_in, LH)

    # conv1: keep only the 3*C1P output channels the floor-mode pool consumes, permuted
    # so pool member r of pooled channel p lands at row r*C1P + p; flatten taps (k, c).
    perm = jnp.asarray([POOL * p + r for r in range(POOL) for p in range(C1P)], jnp.int32)
    w1f = jnp.transpose(w1[perm], (0, 2, 1)).reshape(POOL * C1P, K1 * C_in)
    bn1 = jnp.stack([s1[perm], b1[perm]], axis=1)              # (3*C1P, 2)
    w2f = jnp.transpose(w2, (2, 1, 0)).reshape(K2 * C1P, C2)   # rows = k*C1P + c
    w3f = jnp.transpose(w3, (2, 1, 0)).reshape(K3 * C2, C2)    # rows = k*C2  + c
    bn23 = jnp.stack([s2, b2, s3, b3], axis=0)                 # (4, C2)

    # 0/1 selection matrix: output column b*L1P + m picks sliding-max column b*L1 + 3m.
    KP, MP = Bt * L1 - 2, Bt * L1P
    cols = jnp.arange(MP)
    want = (cols // L1P) * L1 + (cols % L1P) * POOL
    sel = (jnp.arange(KP)[:, None] == want[None, :]).astype(jnp.float32)

    kernel = _make_kernel(Bt, C_in, K1, C1P, L1, L1P, K2, C2, L2, K3, L3)
    out = pl.pallas_call(
        kernel,
        # lane-dense output layout: (L3, B*C2); batch tile g owns columns [g*Bt*C2, ...)
        out_shape=jax.ShapeDtypeStruct((L3, B * C2), jnp.float32),
        grid=(G,),
        in_specs=[
            pl.BlockSpec((Bt, 2, C_in, LH), lambda g: (g, 0, 0, 0)),
            pl.BlockSpec((POOL * C1P, K1 * C_in), lambda g: (0, 0)),
            pl.BlockSpec((POOL * C1P, 2), lambda g: (0, 0)),
            pl.BlockSpec((K2 * C1P, C2), lambda g: (0, 0)),
            pl.BlockSpec((K3 * C2, C2), lambda g: (0, 0)),
            pl.BlockSpec((4, C2), lambda g: (0, 0)),
            pl.BlockSpec((KP, MP), lambda g: (0, 0)),
        ],
        out_specs=pl.BlockSpec((L3, Bt * C2), lambda g: (0, g)),
        compiler_params=pltpu.CompilerParams(dimension_semantics=("parallel",)),
    )(x2, w1f, bn1, w2f, w3f, bn23, sel)

    # layout plumbing only: (L3, B*C2) -> (B, C2, L3), NCL like PyTorch
    return jnp.transpose(out.reshape(L3, B, C2), (1, 2, 0))


def make_params(key, c_in, hidden):
    """Deterministic parameter init (Conv1d weights + folded BatchNorm scale/shift)."""
    c2 = hidden * 2
    c1p = hidden // POOL
    ks = jax.random.split(key, 15)

    w1 = jax.random.normal(ks[0], (hidden, c_in, 13), jnp.float32) / jnp.sqrt(c_in * 13.0)
    w2 = jax.random.normal(ks[1], (c2, c1p, 7), jnp.float32) / jnp.sqrt(c1p * 7.0)
    w3 = jax.random.normal(ks[2], (c2, c2, 5), jnp.float32) / jnp.sqrt(c2 * 5.0)

    def bn(kg, kb, km, kv, c):
        gamma = 1.0 + 0.1 * jax.random.normal(kg, (c,), jnp.float32)
        beta = 0.1 * jax.random.normal(kb, (c,), jnp.float32)
        mean = 0.1 * jax.random.normal(km, (c,), jnp.float32)
        var = 1.0 + 0.1 * jnp.abs(jax.random.normal(kv, (c,), jnp.float32))
        scale = gamma / jnp.sqrt(var + 1e-5)
        shift = beta - mean * scale
        return scale, shift

    s1, b1 = bn(ks[3], ks[4], ks[5], ks[6], hidden)
    s2, b2 = bn(ks[7], ks[8], ks[9], ks[10], c2)
    s3, b3 = bn(ks[11], ks[12], ks[13], ks[14], c2)
    return (w1, s1, b1, w2, s2, b2, w3, s3, b3)


def reference(x, params):
    """Pure-JAX reference of the PyTorch forward (eval mode)."""
    w1, s1, b1, w2, s2, b2, w3, s3, b3 = params
    dn = ('NCH', 'OIH', 'NCH')
    y = lax.conv_general_dilated(x, w1, (2,), 'VALID', dimension_numbers=dn)
    y = y * s1[None, :, None] + b1[None, :, None]
    y = lax.reduce_window(y, -jnp.inf, lax.max,
                          (1, POOL, POOL), (1, POOL, POOL), 'VALID')
    y = lax.conv_general_dilated(y, w2, (1,), 'VALID', dimension_numbers=dn)
    y = y * s2[None, :, None] + b2[None, :, None]
    y = lax.conv_general_dilated(y, w3, (1,), 'VALID', dimension_numbers=dn)
    y = y * s3[None, :, None] + b3[None, :, None]
    return y


if __name__ == "__main__":
    key = jax.random.PRNGKey(0)
    kx, kp = jax.random.split(key)

    B, C_IN, L = 8, 4, 128       # small NCL input for Conv1d
    HIDDEN = 32                  # config.hidden_size_1d

    x = jax.random.normal(kx, (B, C_IN, L), jnp.float32)
    params = make_params(kp, C_IN, HIDDEN)

    out = three_layer_conv1d_unit(x, params)
    out = jax.block_until_ready(out)

    ref = reference(x, params)
    assert out.shape == ref.shape == (B, 2 * HIDDEN, 9), (out.shape, ref.shape)
    max_err = float(jnp.max(jnp.abs(out - ref)))
    assert jnp.allclose(out, ref, atol=5e-2, rtol=5e-2), max_err

    print("KERNEL_OK")
</pallas_src>

<mosaic_0001>
module attributes {stable_mosaic.version = 11 : i64} {
  func.func @kernel(%arg0: i32, %arg1: memref<4x2x4x64xf32, #tpu.memory_space<vmem>>, %arg2: memref<30x52xf32, #tpu.memory_space<vmem>>, %arg3: memref<30x2xf32, #tpu.memory_space<vmem>>, %arg4: memref<70x64xf32, #tpu.memory_space<vmem>>, %arg5: memref<320x64xf32, #tpu.memory_space<vmem>>, %arg6: memref<4x64xf32, #tpu.memory_space<vmem>>, %arg7: memref<230x76xf32, #tpu.memory_space<vmem>>, %arg8: memref<9x256xf32, #tpu.memory_space<vmem>>) attributes {dimension_semantics = [#tpu.dimension_semantics<parallel>], iteration_bounds = array<i64: 2>, scalar_prefetch = 0 : i64, scratch_operands = 0 : i64, tpu.core_type = #tpu.core_type<tc>, window_params = [{transform_indices = @transform_0, window_bounds = array<i64: 4, 2, 4, 64>}, {pipeline_mode = #tpu.pipeline_mode<synchronous>, transform_indices = @transform_1, window_bounds = array<i64: 30, 52>}, {pipeline_mode = #tpu.pipeline_mode<synchronous>, transform_indices = @transform_2, window_bounds = array<i64: 30, 2>}, {pipeline_mode = #tpu.pipeline_mode<synchronous>, transform_indices = @transform_3, window_bounds = array<i64: 70, 64>}, {pipeline_mode = #tpu.pipeline_mode<synchronous>, transform_indices = @transform_4, window_bounds = array<i64: 320, 64>}, {pipeline_mode = #tpu.pipeline_mode<synchronous>, transform_indices = @transform_5, window_bounds = array<i64: 4, 64>}, {pipeline_mode = #tpu.pipeline_mode<synchronous>, transform_indices = @transform_6, window_bounds = array<i64: 230, 76>}, {transform_indices = @transform_7, window_bounds = array<i64: 9, 256>}]} {
    %c0 = arith.constant 0 : index
    %c0_0 = arith.constant 0 : index
    %c0_1 = arith.constant 0 : index
    %c0_2 = arith.constant 0 : index
    %0 = vector.load %arg1[%c0, %c0_0, %c0_1, %c0_2] : memref<4x2x4x64xf32, #tpu.memory_space<vmem>>, vector<1x1x4x58xf32>
    %1 = vector.shape_cast %0 : vector<1x1x4x58xf32> to vector<4x58xf32>
    %c0_3 = arith.constant 0 : index
    %c1 = arith.constant 1 : index
    %c0_4 = arith.constant 0 : index
    %c0_5 = arith.constant 0 : index
    %2 = vector.load %arg1[%c0_3, %c1, %c0_4, %c0_5] : memref<4x2x4x64xf32, #tpu.memory_space<vmem>>, vector<1x1x4x58xf32>
    %3 = vector.shape_cast %2 : vector<1x1x4x58xf32> to vector<4x58xf32>
    %c0_6 = arith.constant 0 : index
    %c0_7 = arith.constant 0 : index
    %c0_8 = arith.constant 0 : index
    %c1_9 = arith.constant 1 : index
    %4 = vector.load %arg1[%c0_6, %c0_7, %c0_8, %c1_9] : memref<4x2x4x64xf32, #tpu.memory_space<vmem>>, vector<1x1x4x58xf32>
    %5 = vector.shape_cast %4 : vector<1x1x4x58xf32> to vector<4x58xf32>
    %c0_10 = arith.constant 0 : index
    %c1_11 = arith.constant 1 : index
    %c0_12 = arith.constant 0 : index
    %c1_13 = arith.constant 1 : index
    %6 = vector.load %arg1[%c0_10, %c1_11, %c0_12, %c1_13] : memref<4x2x4x64xf32, #tpu.memory_space<vmem>>, vector<1x1x4x58xf32>
    %7 = vector.shape_cast %6 : vector<1x1x4x58xf32> to vector<4x58xf32>
    %c0_14 = arith.constant 0 : index
    %c0_15 = arith.constant 0 : index
    %c0_16 = arith.constant 0 : index
    %c2 = arith.constant 2 : index
    %8 = vector.load %arg1[%c0_14, %c0_15, %c0_16, %c2] : memref<4x2x4x64xf32, #tpu.memory_space<vmem>>, vector<1x1x4x58xf32>
    %9 = vector.shape_cast %8 : vector<1x1x4x58xf32> to vector<4x58xf32>
    %c0_17 = arith.constant 0 : index
    %c1_18 = arith.constant 1 : index
    %c0_19 = arith.constant 0 : index
    %c2_20 = arith.constant 2 : index
    %10 = vector.load %arg1[%c0_17, %c1_18, %c0_19, %c2_20] : memref<4x2x4x64xf32, #tpu.memory_space<vmem>>, vector<1x1x4x58xf32>
    %11 = vector.shape_cast %10 : vector<1x1x4x58xf32> to vector<4x58xf32>
    %c0_21 = arith.constant 0 : index
    %c0_22 = arith.constant 0 : index
    %c0_23 = arith.constant 0 : index
    %c3 = arith.constant 3 : index
    %12 = vector.load %arg1[%c0_21, %c0_22, %c0_23, %c3] : memref<4x2x4x64xf32, #tpu.memory_space<vmem>>, vector<1x1x4x58xf32>
    %13 = vector.shape_cast %12 : vector<1x1x4x58xf32> to vector<4x58xf32>
    %c0_24 = arith.constant 0 : index
    %c1_25 = arith.constant 1 : index
    %c0_26 = arith.constant 0 : index
    %c3_27 = arith.constant 3 : index
    %14 = vector.load %arg1[%c0_24, %c1_25, %c0_26, %c3_27] : memref<4x2x4x64xf32, #tpu.memory_space<vmem>>, vector<1x1x4x58xf32>
    %15 = vector.shape_cast %14 : vector<1x1x4x58xf32> to vector<4x58xf32>
    %c0_28 = arith.constant 0 : index
    %c0_29 = arith.constant 0 : index
    %c0_30 = arith.constant 0 : index
    %c4 = arith.constant 4 : index
    %16 = vector.load %arg1[%c0_28, %c0_29, %c0_30, %c4] : memref<4x2x4x64xf32, #tpu.memory_space<vmem>>, vector<1x1x4x58xf32>
    %17 = vector.shape_cast %16 : vector<1x1x4x58xf32> to vector<4x58xf32>
    %c0_31 = arith.constant 0 : index
    %c1_32 = arith.constant 1 : index
    %c0_33 = arith.constant 0 : index
    %c4_34 = arith.constant 4 : index
    %18 = vector.load %arg1[%c0_31, %c1_32, %c0_33, %c4_34] : memref<4x2x4x64xf32, #tpu.memory_space<vmem>>, vector<1x1x4x58xf32>
    %19 = vector.shape_cast %18 : vector<1x1x4x58xf32> to vector<4x58xf32>
    %c0_35 = arith.constant 0 : index
    %c0_36 = arith.constant 0 : index
    %c0_37 = arith.constant 0 : index
    %c5 = arith.constant 5 : index
    %20 = vector.load %arg1[%c0_35, %c0_36, %c0_37, %c5] : memref<4x2x4x64xf32, #tpu.memory_space<vmem>>, vector<1x1x4x58xf32>
    %21 = vector.shape_cast %20 : vector<1x1x4x58xf32> to vector<4x58xf32>
    %c0_38 = arith.constant 0 : index
    %c1_39 = arith.constant 1 : index
    %c0_40 = arith.constant 0 : index
    %c5_41 = arith.constant 5 : index
    %22 = vector.load %arg1[%c0_38, %c1_39, %c0_40, %c5_41] : memref<4x2x4x64xf32, #tpu.memory_space<vmem>>, vector<1x1x4x58xf32>
    %23 = vector.shape_cast %22 : vector<1x1x4x58xf32> to vector<4x58xf32>
    %c0_42 = arith.constant 0 : index
    %c0_43 = arith.constant 0 : index
    %c0_44 = arith.constant 0 : index
    %c6 = arith.constant 6 : index
    %24 = vector.load %arg1[%c0_42, %c0_43, %c0_44, %c6] : memref<4x2x4x64xf32, #tpu.memory_space<vmem>>, vector<1x1x4x58xf32>
    %25 = vector.shape_cast %24 : vector<1x1x4x58xf32> to vector<4x58xf32>
    %26 = tpu.concatenate %1, %3, %5, %7, %9, %11, %13, %15, %17, %19, %21, %23, %25 in 0 : vector<4x58xf32>, vector<4x58xf32>, vector<4x58xf32>, vector<4x58xf32>, vector<4x58xf32>, vector<4x58xf32>, vector<4x58xf32>, vector<4x58xf32>, vector<4x58xf32>, vector<4x58xf32>, vector<4x58xf32>, vector<4x58xf32>, vector<4x58xf32> -> vector<52x58xf32>
    %c1_45 = arith.constant 1 : index
    %c0_46 = arith.constant 0 : index
    %c0_47 = arith.constant 0 : index
    %c0_48 = arith.constant 0 : index
    %27 = vector.load %arg1[%c1_45, %c0_46, %c0_47, %c0_48] : memref<4x2x4x64xf32, #tpu.memory_space<vmem>>, vector<1x1x4x58xf32>
    %28 = vector.shape_cast %27 : vector<1x1x4x58xf32> to vector<4x58xf32>
    %c1_49 = arith.constant 1 : index
    %c1_50 = arith.constant 1 : index
    %c0_51 = arith.constant 0 : index
    %c0_52 = arith.constant 0 : index
    %29 = vector.load %arg1[%c1_49, %c1_50, %c0_51, %c0_52] : memref<4x2x4x64xf32, #tpu.memory_space<vmem>>, vector<1x1x4x58xf32>
    %30 = vector.shape_cast %29 : vector<1x1x4x58xf32> to vector<4x58xf32>
    %c1_53 = arith.constant 1 : index
    %c0_54 = arith.constant 0 : index
    %c0_55 = arith.constant 0 : index
    %c1_56 = arith.constant 1 : index
    %31 = vector.load %arg1[%c1_53, %c0_54, %c0_55, %c1_56] : memref<4x2x4x64xf32, #tpu.memory_space<vmem>>, vector<1x1x4x58xf32>
    %32 = vector.shape_cast %31 : vector<1x1x4x58xf32> to vector<4x58xf32>
    %c1_57 = arith.constant 1 : index
    %c1_58 = arith.constant 1 : index
    %c0_59 = arith.constant 0 : index
    %c1_60 = arith.constant 1 : index
    %33 = vector.load %arg1[%c1_57, %c1_58, %c0_59, %c1_60] : memref<4x2x4x64xf32, #tpu.memory_space<vmem>>, vector<1x1x4x58xf32>
    %34 = vector.shape_cast %33 : vector<1x1x4x58xf32> to vector<4x58xf32>
    %c1_61 = arith.constant 1 : index
    %c0_62 = arith.constant 0 : index
    %c0_63 = arith.constant 0 : index
    %c2_64 = arith.constant 2 : index
    %35 = vector.load %arg1[%c1_61, %c0_62, %c0_63, %c2_64] : memref<4x2x4x64xf32, #tpu.memory_space<vmem>>, vector<1x1x4x58xf32>
    %36 = vector.shape_cast %35 : vector<1x1x4x58xf32> to vector<4x58xf32>
    %c1_65 = arith.constant 1 : index
    %c1_66 = arith.constant 1 : index
    %c0_67 = arith.constant 0 : index
    %c2_68 = arith.constant 2 : index
    %37 = vector.load %arg1[%c1_65, %c1_66, %c0_67, %c2_68] : memref<4x2x4x64xf32, #tpu.memory_space<vmem>>, vector<1x1x4x58xf32>
    %38 = vector.shape_cast %37 : vector<1x1x4x58xf32> to vector<4x58xf32>
    %c1_69 = arith.constant 1 : index
    %c0_70 = arith.constant 0 : index
    %c0_71 = arith.constant 0 : index
    %c3_72 = arith.constant 3 : index
    %39 = vector.load %arg1[%c1_69, %c0_70, %c0_71, %c3_72] : memref<4x2x4x64xf32, #tpu.memory_space<vmem>>, vector<1x1x4x58xf32>
    %40 = vector.shape_cast %39 : vector<1x1x4x58xf32> to vector<4x58xf32>
    %c1_73 = arith.constant 1 : index
    %c1_74 = arith.constant 1 : index
    %c0_75 = arith.constant 0 : index
    %c3_76 = arith.constant 3 : index
    %41 = vector.load %arg1[%c1_73, %c1_74, %c0_75, %c3_76] : memref<4x2x4x64xf32, #tpu.memory_space<vmem>>, vector<1x1x4x58xf32>
    %42 = vector.shape_cast %41 : vector<1x1x4x58xf32> to vector<4x58xf32>
    %c1_77 = arith.constant 1 : index
    %c0_78 = arith.constant 0 : index
    %c0_79 = arith.constant 0 : index
    %c4_80 = arith.constant 4 : index
    %43 = vector.load %arg1[%c1_77, %c0_78, %c0_79, %c4_80] : memref<4x2x4x64xf32, #tpu.memory_space<vmem>>, vector<1x1x4x58xf32>
    %44 = vector.shape_cast %43 : vector<1x1x4x58xf32> to vector<4x58xf32>
    %c1_81 = arith.constant 1 : index
    %c1_82 = arith.constant 1 : index
    %c0_83 = arith.constant 0 : index
    %c4_84 = arith.constant 4 : index
    %45 = vector.load %arg1[%c1_81, %c1_82, %c0_83, %c4_84] : memref<4x2x4x64xf32, #tpu.memory_space<vmem>>, vector<1x1x4x58xf32>
    %46 = vector.shape_cast %45 : vector<1x1x4x58xf32> to vector<4x58xf32>
    %c1_85 = arith.constant 1 : index
    %c0_86 = arith.constant 0 : index
    %c0_87 = arith.constant 0 : index
    %c5_88 = arith.constant 5 : index
    %47 = vector.load %arg1[%c1_85, %c0_86, %c0_87, %c5_88] : memref<4x2x4x64xf32, #tpu.memory_space<vmem>>, vector<1x1x4x58xf32>
    %48 = vector.shape_cast %47 : vector<1x1x4x58xf32> to vector<4x58xf32>
    %c1_89 = arith.constant 1 : index
    %c1_90 = arith.constant 1 : index
    %c0_91 = arith.constant 0 : index
    %c5_92 = arith.constant 5 : index
    %49 = vector.load %arg1[%c1_89, %c1_90, %c0_91, %c5_92] : memref<4x2x4x64xf32, #tpu.memory_space<vmem>>, vector<1x1x4x58xf32>
    %50 = vector.shape_cast %49 : vector<1x1x4x58xf32> to vector<4x58xf32>
    %c1_93 = arith.constant 1 : index
    %c0_94 = arith.constant 0 : index
    %c0_95 = arith.constant 0 : index
    %c6_96 = arith.constant 6 : index
    %51 = vector.load %arg1[%c1_93, %c0_94, %c0_95, %c6_96] : memref<4x2x4x64xf32, #tpu.memory_space<vmem>>, vector<1x1x4x58xf32>
    %52 = vector.shape_cast %51 : vector<1x1x4x58xf32> to vector<4x58xf32>
    %53 = tpu.concatenate %28, %30, %32, %34, %36, %38, %40, %42, %44, %46, %48, %50, %52 in 0 : vector<4x58xf32>, vector<4x58xf32>, vector<4x58xf32>, vector<4x58xf32>, vector<4x58xf32>, vector<4x58xf32>, vector<4x58xf32>, vector<4x58xf32>, vector<4x58xf32>, vector<4x58xf32>, vector<4x58xf32>, vector<4x58xf32>, vector<4x58xf32> -> vector<52x58xf32>
    %c2_97 = arith.constant 2 : index
    %c0_98 = arith.constant 0 : index
    %c0_99 = arith.constant 0 : index
    %c0_100 = arith.constant 0 : index
    %54 = vector.load %arg1[%c2_97, %c0_98, %c0_99, %c0_100] : memref<4x2x4x64xf32, #tpu.memory_space<vmem>>, vector<1x1x4x58xf32>
    %55 = vector.shape_cast %54 : vector<1x1x4x58xf32> to vector<4x58xf32>
    %c2_101 = arith.constant 2 : index
    %c1_102 = arith.constant 1 : index
    %c0_103 = arith.constant 0 : index
    %c0_104 = arith.constant 0 : index
    %56 = vector.load %arg1[%c2_101, %c1_102, %c0_103, %c0_104] : memref<4x2x4x64xf32, #tpu.memory_space<vmem>>, vector<1x1x4x58xf32>
    %57 = vector.shape_cast %56 : vector<1x1x4x58xf32> to vector<4x58xf32>
    %c2_105 = arith.constant 2 : index
    %c0_106 = arith.constant 0 : index
    %c0_107 = arith.constant 0 : index
    %c1_108 = arith.constant 1 : index
    %58 = vector.load %arg1[%c2_105, %c0_106, %c0_107, %c1_108] : memref<4x2x4x64xf32, #tpu.memory_space<vmem>>, vector<1x1x4x58xf32>
    %59 = vector.shape_cast %58 : vector<1x1x4x58xf32> to vector<4x58xf32>
    %c2_109 = arith.constant 2 : index
    %c1_110 = arith.constant 1 : index
    %c0_111 = arith.constant 0 : index
    %c1_112 = arith.constant 1 : index
    %60 = vector.load %arg1[%c2_109, %c1_110, %c0_111, %c1_112] : memref<4x2x4x64xf32, #tpu.memory_space<vmem>>, vector<1x1x4x58xf32>
    %61 = vector.shape_cast %60 : vector<1x1x4x58xf32> to vector<4x58xf32>
    %c2_113 = arith.constant 2 : index
    %c0_114 = arith.constant 0 : index
    %c0_115 = arith.constant 0 : index
    %c2_116 = arith.constant 2 : index
    %62 = vector.load %arg1[%c2_113, %c0_114, %c0_115, %c2_116] : memref<4x2x4x64xf32, #tpu.memory_space<vmem>>, vector<1x1x4x58xf32>
    %63 = vector.shape_cast %62 : vector<1x1x4x58xf32> to vector<4x58xf32>
    %c2_117 = arith.constant 2 : index
    %c1_118 = arith.constant 1 : index
    %c0_119 = arith.constant 0 : index
    %c2_120 = arith.constant 2 : index
    %64 = vector.load %arg1[%c2_117, %c1_118, %c0_119, %c2_120] : memref<4x2x4x64xf32, #tpu.memory_space<vmem>>, vector<1x1x4x58xf32>
    %65 = vector.shape_cast %64 : vector<1x1x4x58xf32> to vector<4x58xf32>
    %c2_121 = arith.constant 2 : index
    %c0_122 = arith.constant 0 : index
    %c0_123 = arith.constant 0 : index
    %c3_124 = arith.constant 3 : index
    %66 = vector.load %arg1[%c2_121, %c0_122, %c0_123, %c3_124] : memref<4x2x4x64xf32, #tpu.memory_space<vmem>>, vector<1x1x4x58xf32>
    %67 = vector.shape_cast %66 : vector<1x1x4x58xf32> to vector<4x58xf32>
    %c2_125 = arith.constant 2 : index
    %c1_126 = arith.constant 1 : index
    %c0_127 = arith.constant 0 : index
    %c3_128 = arith.constant 3 : index
    %68 = vector.load %arg1[%c2_125, %c1_126, %c0_127, %c3_128] : memref<4x2x4x64xf32, #tpu.memory_space<vmem>>, vector<1x1x4x58xf32>
    %69 = vector.shape_cast %68 : vector<1x1x4x58xf32> to vector<4x58xf32>
    %c2_129 = arith.constant 2 : index
    %c0_130 = arith.constant 0 : index
    %c0_131 = arith.constant 0 : index
    %c4_132 = arith.constant 4 : index
    %70 = vector.load %arg1[%c2_129, %c0_130, %c0_131, %c4_132] : memref<4x2x4x64xf32, #tpu.memory_space<vmem>>, vector<1x1x4x58xf32>
    %71 = vector.shape_cast %70 : vector<1x1x4x58xf32> to vector<4x58xf32>
    %c2_133 = arith.constant 2 : index
    %c1_134 = arith.constant 1 : index
    %c0_135 = arith.constant 0 : index
    %c4_136 = arith.constant 4 : index
    %72 = vector.load %arg1[%c2_133, %c1_134, %c0_135, %c4_136] : memref<4x2x4x64xf32, #tpu.memory_space<vmem>>, vector<1x1x4x58xf32>
    %73 = vector.shape_cast %72 : vector<1x1x4x58xf32> to vector<4x58xf32>
    %c2_137 = arith.constant 2 : index
    %c0_138 = arith.constant 0 : index
    %c0_139 = arith.constant 0 : index
    %c5_140 = arith.constant 5 : index
    %74 = vector.load %arg1[%c2_137, %c0_138, %c0_139, %c5_140] : memref<4x2x4x64xf32, #tpu.memory_space<vmem>>, vector<1x1x4x58xf32>
    %75 = vector.shape_cast %74 : vector<1x1x4x58xf32> to vector<4x58xf32>
    %c2_141 = arith.constant 2 : index
    %c1_142 = arith.constant 1 : index
    %c0_143 = arith.constant 0 : index
    %c5_144 = arith.constant 5 : index
    %76 = vector.load %arg1[%c2_141, %c1_142, %c0_143, %c5_144] : memref<4x2x4x64xf32, #tpu.memory_space<vmem>>, vector<1x1x4x58xf32>
    %77 = vector.shape_cast %76 : vector<1x1x4x58xf32> to vector<4x58xf32>
    %c2_145 = arith.constant 2 : index
    %c0_146 = arith.constant 0 : index
    %c0_147 = arith.constant 0 : index
    %c6_148 = arith.constant 6 : index
    %78 = vector.load %arg1[%c2_145, %c0_146, %c0_147, %c6_148] : memref<4x2x4x64xf32, #tpu.memory_space<vmem>>, vector<1x1x4x58xf32>
    %79 = vector.shape_cast %78 : vector<1x1x4x58xf32> to vector<4x58xf32>
    %80 = tpu.concatenate %55, %57, %59, %61, %63, %65, %67, %69, %71, %73, %75, %77, %79 in 0 : vector<4x58xf32>, vector<4x58xf32>, vector<4x58xf32>, vector<4x58xf32>, vector<4x58xf32>, vector<4x58xf32>, vector<4x58xf32>, vector<4x58xf32>, vector<4x58xf32>, vector<4x58xf32>, vector<4x58xf32>, vector<4x58xf32>, vector<4x58xf32> -> vector<52x58xf32>
    %c3_149 = arith.constant 3 : index
    %c0_150 = arith.constant 0 : index
    %c0_151 = arith.constant 0 : index
    %c0_152 = arith.constant 0 : index
    %81 = vector.load %arg1[%c3_149, %c0_150, %c0_151, %c0_152] : memref<4x2x4x64xf32, #tpu.memory_space<vmem>>, vector<1x1x4x58xf32>
    %82 = vector.shape_cast %81 : vector<1x1x4x58xf32> to vector<4x58xf32>
    %c3_153 = arith.constant 3 : index
    %c1_154 = arith.constant 1 : index
    %c0_155 = arith.constant 0 : index
    %c0_156 = arith.constant 0 : index
    %83 = vector.load %arg1[%c3_153, %c1_154, %c0_155, %c0_156] : memref<4x2x4x64xf32, #tpu.memory_space<vmem>>, vector<1x1x4x58xf32>
    %84 = vector.shape_cast %83 : vector<1x1x4x58xf32> to vector<4x58xf32>
    %c3_157 = arith.constant 3 : index
    %c0_158 = arith.constant 0 : index
    %c0_159 = arith.constant 0 : index
    %c1_160 = arith.constant 1 : index
    %85 = vector.load %arg1[%c3_157, %c0_158, %c0_159, %c1_160] : memref<4x2x4x64xf32, #tpu.memory_space<vmem>>, vector<1x1x4x58xf32>
    %86 = vector.shape_cast %85 : vector<1x1x4x58xf32> to vector<4x58xf32>
    %c3_161 = arith.constant 3 : index
    %c1_162 = arith.constant 1 : index
    %c0_163 = arith.constant 0 : index
    %c1_164 = arith.constant 1 : index
    %87 = vector.load %arg1[%c3_161, %c1_162, %c0_163, %c1_164] : memref<4x2x4x64xf32, #tpu.memory_space<vmem>>, vector<1x1x4x58xf32>
    %88 = vector.shape_cast %87 : vector<1x1x4x58xf32> to vector<4x58xf32>
    %c3_165 = arith.constant 3 : index
    %c0_166 = arith.constant 0 : index
    %c0_167 = arith.constant 0 : index
    %c2_168 = arith.constant 2 : index
    %89 = vector.load %arg1[%c3_165, %c0_166, %c0_167, %c2_168] : memref<4x2x4x64xf32, #tpu.memory_space<vmem>>, vector<1x1x4x58xf32>
    %90 = vector.shape_cast %89 : vector<1x1x4x58xf32> to vector<4x58xf32>
    %c3_169 = arith.constant 3 : index
    %c1_170 = arith.constant 1 : index
    %c0_171 = arith.constant 0 : index
    %c2_172 = arith.constant 2 : index
    %91 = vector.load %arg1[%c3_169, %c1_170, %c0_171, %c2_172] : memref<4x2x4x64xf32, #tpu.memory_space<vmem>>, vector<1x1x4x58xf32>
    %92 = vector.shape_cast %91 : vector<1x1x4x58xf32> to vector<4x58xf32>
    %c3_173 = arith.constant 3 : index
    %c0_174 = arith.constant 0 : index
    %c0_175 = arith.constant 0 : index
    %c3_176 = arith.constant 3 : index
    %93 = vector.load %arg1[%c3_173, %c0_174, %c0_175, %c3_176] : memref<4x2x4x64xf32, #tpu.memory_space<vmem>>, vector<1x1x4x58xf32>
    %94 = vector.shape_cast %93 : vector<1x1x4x58xf32> to vector<4x58xf32>
    %c3_177 = arith.constant 3 : index
    %c1_178 = arith.constant 1 : index
    %c0_179 = arith.constant 0 : index
    %c3_180 = arith.constant 3 : index
    %95 = vector.load %arg1[%c3_177, %c1_178, %c0_179, %c3_180] : memref<4x2x4x64xf32, #tpu.memory_space<vmem>>, vector<1x1x4x58xf32>
    %96 = vector.shape_cast %95 : vector<1x1x4x58xf32> to vector<4x58xf32>
    %c3_181 = arith.constant 3 : index
    %c0_182 = arith.constant 0 : index
    %c0_183 = arith.constant 0 : index
    %c4_184 = arith.constant 4 : index
    %97 = vector.load %arg1[%c3_181, %c0_182, %c0_183, %c4_184] : memref<4x2x4x64xf32, #tpu.memory_space<vmem>>, vector<1x1x4x58xf32>
    %98 = vector.shape_cast %97 : vector<1x1x4x58xf32> to vector<4x58xf32>
    %c3_185 = arith.constant 3 : index
    %c1_186 = arith.constant 1 : index
    %c0_187 = arith.constant 0 : index
    %c4_188 = arith.constant 4 : index
    %99 = vector.load %arg1[%c3_185, %c1_186, %c0_187, %c4_188] : memref<4x2x4x64xf32, #tpu.memory_space<vmem>>, vector<1x1x4x58xf32>
    %100 = vector.shape_cast %99 : vector<1x1x4x58xf32> to vector<4x58xf32>
    %c3_189 = arith.constant 3 : index
    %c0_190 = arith.constant 0 : index
    %c0_191 = arith.constant 0 : index
    %c5_192 = arith.constant 5 : index
    %101 = vector.load %arg1[%c3_189, %c0_190, %c0_191, %c5_192] : memref<4x2x4x64xf32, #tpu.memory_space<vmem>>, vector<1x1x4x58xf32>
    %102 = vector.shape_cast %101 : vector<1x1x4x58xf32> to vector<4x58xf32>
    %c3_193 = arith.constant 3 : index
    %c1_194 = arith.constant 1 : index
    %c0_195 = arith.constant 0 : index
    %c5_196 = arith.constant 5 : index
    %103 = vector.load %arg1[%c3_193, %c1_194, %c0_195, %c5_196] : memref<4x2x4x64xf32, #tpu.memory_space<vmem>>, vector<1x1x4x58xf32>
    %104 = vector.shape_cast %103 : vector<1x1x4x58xf32> to vector<4x58xf32>
    %c3_197 = arith.constant 3 : index
    %c0_198 = arith.constant 0 : index
    %c0_199 = arith.constant 0 : index
    %c6_200 = arith.constant 6 : index
    %105 = vector.load %arg1[%c3_197, %c0_198, %c0_199, %c6_200] : memref<4x2x4x64xf32, #tpu.memory_space<vmem>>, vector<1x1x4x58xf32>
    %106 = vector.shape_cast %105 : vector<1x1x4x58xf32> to vector<4x58xf32>
    %107 = tpu.concatenate %82, %84, %86, %88, %90, %92, %94, %96, %98, %100, %102, %104, %106 in 0 : vector<4x58xf32>, vector<4x58xf32>, vector<4x58xf32>, vector<4x58xf32>, vector<4x58xf32>, vector<4x58xf32>, vector<4x58xf32>, vector<4x58xf32>, vector<4x58xf32>, vector<4x58xf32>, vector<4x58xf32>, vector<4x58xf32>, vector<4x58xf32> -> vector<52x58xf32>
    %108 = tpu.concatenate %26, %53, %80, %107 in 1 : vector<52x58xf32>, vector<52x58xf32>, vector<52x58xf32>, vector<52x58xf32> -> vector<52x232xf32>
    %c0_201 = arith.constant 0 : index
    %c0_202 = arith.constant 0 : index
    %109 = vector.load %arg2[%c0_201, %c0_202] : memref<30x52xf32, #tpu.memory_space<vmem>>, vector<30x52xf32>
    %cst = arith.constant dense<0.000000e+00> : vector<30x232xf32>
    %110 = tpu.matmul %109, %108, %cst {dimension_numbers = #tpu.dot_dimension_numbers<[1], [0], [0], [1], [0, 0, 1, 1], [], []>} : vector<30x52xf32>, vector<52x232xf32>, vector<30x232xf32> -> vector<30x232xf32>
    %c0_203 = arith.constant 0 : index
    %c0_204 = arith.constant 0 : index
    %111 = vector.load %arg3[%c0_203, %c0_204] : memref<30x2xf32, #tpu.memory_space<vmem>>, vector<30x1xf32>
    %112 = vector.broadcast %111 : vector<30x1xf32> to vector<30x232xf32>
    %113 = arith.mulf %110, %112 : vector<30x232xf32>
    %c0_205 = arith.constant 0 : index
    %c1_206 = arith.constant 1 : index
    %114 = vector.load %arg3[%c0_205, %c1_206] : memref<30x2xf32, #tpu.memory_space<vmem>>, vector<30x1xf32>
    %115 = vector.broadcast %114 : vector<30x1xf32> to vector<30x232xf32>
    %116 = arith.addf %113, %115 : vector<30x232xf32>
    %117 = vector.extract_strided_slice %116 {offsets = [0, 0], sizes = [10, 232], strides = [1, 1]} : vector<30x232xf32> to vector<10x232xf32>
    %118 = vector.extract_strided_slice %116 {offsets = [10, 0], sizes = [10, 232], strides = [1, 1]} : vector<30x232xf32> to vector<10x232xf32>
    %119 = arith.maximumf %117, %118 : vector<10x232xf32>
    %120 = vector.extract_strided_slice %116 {offsets = [20, 0], sizes = [10, 232], strides = [1, 1]} : vector<30x232xf32> to vector<10x232xf32>
    %121 = arith.maximumf %119, %120 : vector<10x232xf32>
    %122 = vector.extract_strided_slice %121 {offsets = [0, 0], sizes = [10, 230], strides = [1, 1]} : vector<10x232xf32> to vector<10x230xf32>
    %123 = vector.extract_strided_slice %121 {offsets = [0, 1], sizes = [10, 230], strides = [1, 1]} : vector<10x232xf32> to vector<10x230xf32>
    %124 = arith.maximumf %122, %123 : vector<10x230xf32>
    %125 = vector.extract_strided_slice %121 {offsets = [0, 2], sizes = [10, 230], strides = [1, 1]} : vector<10x232xf32> to vector<10x230xf32>
    %126 = arith.maximumf %124, %125 : vector<10x230xf32>
    %c0_207 = arith.constant 0 : index
    %c0_208 = arith.constant 0 : index
    %127 = vector.load %arg7[%c0_207, %c0_208] : memref<230x76xf32, #tpu.memory_space<vmem>>, vector<230x76xf32>
    %cst_209 = arith.constant dense<0.000000e+00> : vector<10x76xf32>
    %128 = tpu.matmul %126, %127, %cst_209 {dimension_numbers = #tpu.dot_dimension_numbers<[1], [0], [0], [1], [0, 0, 1, 1], [], []>} : vector<10x230xf32>, vector<230x76xf32>, vector<10x76xf32> -> vector<10x76xf32>
    %129 = tpu.transpose %128, [1, 0] : vector<10x76xf32> -> vector<76x10xf32>
    %130 = vector.extract_strided_slice %129 {offsets = [0, 0], sizes = [13, 10], strides = [1, 1]} : vector<76x10xf32> to vector<13x10xf32>
    %131 = vector.extract_strided_slice %129 {offsets = [1, 0], sizes = [13, 10], strides = [1, 1]} : vector<76x10xf32> to vector<13x10xf32>
    %132 = vector.extract_strided_slice %129 {offsets = [2, 0], sizes = [13, 10], strides = [1, 1]} : vector<76x10xf32> to vector<13x10xf32>
    %133 = vector.extract_strided_slice %129 {offsets = [3, 0], sizes = [13, 10], strides = [1, 1]} : vector<76x10xf32> to vector<13x10xf32>
    %134 = vector.extract_strided_slice %129 {offsets = [4, 0], sizes = [13, 10], strides = [1, 1]} : vector<76x10xf32> to vector<13x10xf32>
    %135 = vector.extract_strided_slice %129 {offsets = [5, 0], sizes = [13, 10], strides = [1, 1]} : vector<76x10xf32> to vector<13x10xf32>
    %136 = vector.extract_strided_slice %129 {offsets = [6, 0], sizes = [13, 10], strides = [1, 1]} : vector<76x10xf32> to vector<13x10xf32>
    %137 = tpu.concatenate %130, %131, %132, %133, %134, %135, %136 in 1 : vector<13x10xf32>, vector<13x10xf32>, vector<13x10xf32>, vector<13x10xf32>, vector<13x10xf32>, vector<13x10xf32>, vector<13x10xf32> -> vector<13x70xf32>
    %138 = vector.extract_strided_slice %129 {offsets = [19, 0], sizes = [13, 10], strides = [1, 1]} : vector<76x10xf32> to vector<13x10xf32>
    %139 = vector.extract_strided_slice %129 {offsets = [20, 0], sizes = [13, 10], strides = [1, 1]} : vector<76x10xf32> to vector<13x10xf32>
    %140 = vector.extract_strided_slice %129 {offsets = [21, 0], sizes = [13, 10], strides = [1, 1]} : vector<76x10xf32> to vector<13x10xf32>
    %141 = vector.extract_strided_slice %129 {offsets = [22, 0], sizes = [13, 10], strides = [1, 1]} : vector<76x10xf32> to vector<13x10xf32>
    %142 = vector.extract_strided_slice %129 {offsets = [23, 0], sizes = [13, 10], strides = [1, 1]} : vector<76x10xf32> to vector<13x10xf32>
    %143 = vector.extract_strided_slice %129 {offsets = [24, 0], sizes = [13, 10], strides = [1, 1]} : vector<76x10xf32> to vector<13x10xf32>
    %144 = vector.extract_strided_slice %129 {offsets = [25, 0], sizes = [13, 10], strides = [1, 1]} : vector<76x10xf32> to vector<13x10xf32>
    %145 = tpu.concatenate %138, %139, %140, %141, %142, %143, %144 in 1 : vector<13x10xf32>, vector<13x10xf32>, vector<13x10xf32>, vector<13x10xf32>, vector<13x10xf32>, vector<13x10xf32>, vector<13x10xf32> -> vector<13x70xf32>
    %146 = vector.extract_strided_slice %129 {offsets = [38, 0], sizes = [13, 10], strides = [1, 1]} : vector<76x10xf32> to vector<13x10xf32>
    %147 = vector.extract_strided_slice %129 {offsets = [39, 0], sizes = [13, 10], strides = [1, 1]} : vector<76x10xf32> to vector<13x10xf32>
    %148 = vector.extract_strided_slice %129 {offsets = [40, 0], sizes = [13, 10], strides = [1, 1]} : vector<76x10xf32> to vector<13x10xf32>
    %149 = vector.extract_strided_slice %129 {offsets = [41, 0], sizes = [13, 10], strides = [1, 1]} : vector<76x10xf32> to vector<13x10xf32>
    %150 = vector.extract_strided_slice %129 {offsets = [42, 0], sizes = [13, 10], strides = [1, 1]} : vector<76x10xf32> to vector<13x10xf32>
    %151 = vector.extract_strided_slice %129 {offsets = [43, 0], sizes = [13, 10], strides = [1, 1]} : vector<76x10xf32> to vector<13x10xf32>
    %152 = vector.extract_strided_slice %129 {offsets = [44, 0], sizes = [13, 10], strides = [1, 1]} : vector<76x10xf32> to vector<13x10xf32>
    %153 = tpu.concatenate %146, %147, %148, %149, %150, %151, %152 in 1 : vector<13x10xf32>, vector<13x10xf32>, vector<13x10xf32>, vector<13x10xf32>, vector<13x10xf32>, vector<13x10xf32>, vector<13x10xf32> -> vector<13x70xf32>
    %154 = vector.extract_strided_slice %129 {offsets = [57, 0], sizes = [13, 10], strides = [1, 1]} : vector<76x10xf32> to vector<13x10xf32>
    %155 = vector.extract_strided_slice %129 {offsets = [58, 0], sizes = [13, 10], strides = [1, 1]} : vector<76x10xf32> to vector<13x10xf32>
    %156 = vector.extract_strided_slice %129 {offsets = [59, 0], sizes = [13, 10], strides = [1, 1]} : vector<76x10xf32> to vector<13x10xf32>
    %157 = vector.extract_strided_slice %129 {offsets = [60, 0], sizes = [13, 10], strides = [1, 1]} : vector<76x10xf32> to vector<13x10xf32>
    %158 = vector.extract_strided_slice %129 {offsets = [61, 0], sizes = [13, 10], strides = [1, 1]} : vector<76x10xf32> to vector<13x10xf32>
    %159 = vector.extract_strided_slice %129 {offsets = [62, 0], sizes = [13, 10], strides = [1, 1]} : vector<76x10xf32> to vector<13x10xf32>
    %160 = vector.extract_strided_slice %129 {offsets = [63, 0], sizes = [13, 10], strides = [1, 1]} : vector<76x10xf32> to vector<13x10xf32>
    %161 = tpu.concatenate %154, %155, %156, %157, %158, %159, %160 in 1 : vector<13x10xf32>, vector<13x10xf32>, vector<13x10xf32>, vector<13x10xf32>, vector<13x10xf32>, vector<13x10xf32>, vector<13x10xf32> -> vector<13x70xf32>
    %162 = tpu.concatenate %137, %145, %153, %161 in 0 : vector<13x70xf32>, vector<13x70xf32>, vector<13x70xf32>, vector<13x70xf32> -> vector<52x70xf32>
    %c0_210 = arith.constant 0 : index
    %c0_211 = arith.constant 0 : index
    %163 = vector.load %arg4[%c0_210, %c0_211] : memref<70x64xf32, #tpu.memory_space<vmem>>, vector<70x64xf32>
    %cst_212 = arith.constant dense<0.000000e+00> : vector<52x64xf32>
    %164 = tpu.matmul %162, %163, %cst_212 {dimension_numbers = #tpu.dot_dimension_numbers<[1], [0], [0], [1], [0, 0, 1, 1], [], []>} : vector<52x70xf32>, vector<70x64xf32>, vector<52x64xf32> -> vector<52x64xf32>
    %c0_213 = arith.constant 0 : index
    %c0_214 = arith.constant 0 : index
    %165 = vector.load %arg6[%c0_213, %c0_214] : memref<4x64xf32, #tpu.memory_space<vmem>>, vector<1x64xf32>
    %166 = vector.broadcast %165 : vector<1x64xf32> to vector<52x64xf32>
    %167 = arith.mulf %164, %166 : vector<52x64xf32>
    %c1_215 = arith.constant 1 : index
    %c0_216 = arith.constant 0 : index
    %168 = vector.load %arg6[%c1_215, %c0_216] : memref<4x64xf32, #tpu.memory_space<vmem>>, vector<1x64xf32>
    %169 = vector.broadcast %168 : vector<1x64xf32> to vector<52x64xf32>
    %170 = arith.addf %167, %169 : vector<52x64xf32>
    %171 = vector.extract_strided_slice %170 {offsets = [0, 0], sizes = [9, 64], strides = [1, 1]} : vector<52x64xf32> to vector<9x64xf32>
    %172 = vector.extract_strided_slice %170 {offsets = [1, 0], sizes = [9, 64], strides = [1, 1]} : vector<52x64xf32> to vector<9x64xf32>
    %173 = vector.extract_strided_slice %170 {offsets = [2, 0], sizes = [9, 64], strides = [1, 1]} : vector<52x64xf32> to vector<9x64xf32>
    %174 = vector.extract_strided_slice %170 {offsets = [3, 0], sizes = [9, 64], strides = [1, 1]} : vector<52x64xf32> to vector<9x64xf32>
    %175 = vector.extract_strided_slice %170 {offsets = [4, 0], sizes = [9, 64], strides = [1, 1]} : vector<52x64xf32> to vector<9x64xf32>
    %176 = tpu.concatenate %171, %172, %173, %174, %175 in 1 : vector<9x64xf32>, vector<9x64xf32>, vector<9x64xf32>, vector<9x64xf32>, vector<9x64xf32> -> vector<9x320xf32>
    %177 = vector.extract_strided_slice %170 {offsets = [13, 0], sizes = [9, 64], strides = [1, 1]} : vector<52x64xf32> to vector<9x64xf32>
    %178 = vector.extract_strided_slice %170 {offsets = [14, 0], sizes = [9, 64], strides = [1, 1]} : vector<52x64xf32> to vector<9x64xf32>
    %179 = vector.extract_strided_slice %170 {offsets = [15, 0], sizes = [9, 64], strides = [1, 1]} : vector<52x64xf32> to vector<9x64xf32>
    %180 = vector.extract_strided_slice %170 {offsets = [16, 0], sizes = [9, 64], strides = [1, 1]} : vector<52x64xf32> to vector<9x64xf32>
    %181 = vector.extract_strided_slice %170 {offsets = [17, 0], sizes = [9, 64], strides = [1, 1]} : vector<52x64xf32> to vector<9x64xf32>
    %182 = tpu.concatenate %177, %178, %179, %180, %181 in 1 : vector<9x64xf32>, vector<9x64xf32>, vector<9x64xf32>, vector<9x64xf32>, vector<9x64xf32> -> vector<9x320xf32>
    %183 = vector.extract_strided_slice %170 {offsets = [26, 0], sizes = [9, 64], strides = [1, 1]} : vector<52x64xf32> to vector<9x64xf32>
    %184 = vector.extract_strided_slice %170 {offsets = [27, 0], sizes = [9, 64], strides = [1, 1]} : vector<52x64xf32> to vector<9x64xf32>
    %185 = vector.extract_strided_slice %170 {offsets = [28, 0], sizes = [9, 64], strides = [1, 1]} : vector<52x64xf32> to vector<9x64xf32>
    %186 = vector.extract_strided_slice %170 {offsets = [29, 0], sizes = [9, 64], strides = [1, 1]} : vector<52x64xf32> to vector<9x64xf32>
    %187 = vector.extract_strided_slice %170 {offsets = [30, 0], sizes = [9, 64], strides = [1, 1]} : vector<52x64xf32> to vector<9x64xf32>
    %188 = tpu.concatenate %183, %184, %185, %186, %187 in 1 : vector<9x64xf32>, vector<9x64xf32>, vector<9x64xf32>, vector<9x64xf32>, vector<9x64xf32> -> vector<9x320xf32>
    %189 = vector.extract_strided_slice %170 {offsets = [39, 0], sizes = [9, 64], strides = [1, 1]} : vector<52x64xf32> to vector<9x64xf32>
    %190 = vector.extract_strided_slice %170 {offsets = [40, 0], sizes = [9, 64], strides = [1, 1]} : vector<52x64xf32> to vector<9x64xf32>
    %191 = vector.extract_strided_slice %170 {offsets = [41, 0], sizes = [9, 64], strides = [1, 1]} : vector<52x64xf32> to vector<9x64xf32>
    %192 = vector.extract_strided_slice %170 {offsets = [42, 0], sizes = [9, 64], strides = [1, 1]} : vector<52x64xf32> to vector<9x64xf32>
    %193 = vector.extract_strided_slice %170 {offsets = [43, 0], sizes = [9, 64], strides = [1, 1]} : vector<52x64xf32> to vector<9x64xf32>
    %194 = tpu.concatenate %189, %190, %191, %192, %193 in 1 : vector<9x64xf32>, vector<9x64xf32>, vector<9x64xf32>, vector<9x64xf32>, vector<9x64xf32> -> vector<9x320xf32>
    %195 = tpu.concatenate %176, %182, %188, %194 in 0 : vector<9x320xf32>, vector<9x320xf32>, vector<9x320xf32>, vector<9x320xf32> -> vector<36x320xf32>
    %c0_217 = arith.constant 0 : index
    %c0_218 = arith.constant 0 : index
    %196 = vector.load %arg5[%c0_217, %c0_218] : memref<320x64xf32, #tpu.memory_space<vmem>>, vector<320x64xf32>
    %cst_219 = arith.constant dense<0.000000e+00> : vector<36x64xf32>
    %197 = tpu.matmul %195, %196, %cst_219 {dimension_numbers = #tpu.dot_dimension_numbers<[1], [0], [0], [1], [0, 0, 1, 1], [], []>} : vector<36x320xf32>, vector<320x64xf32>, vector<36x64xf32> -> vector<36x64xf32>
    %c2_220 = arith.constant 2 : index
    %c0_221 = arith.constant 0 : index
    %198 = vector.load %arg6[%c2_220, %c0_221] : memref<4x64xf32, #tpu.memory_space<vmem>>, vector<1x64xf32>
    %199 = vector.broadcast %198 : vector<1x64xf32> to vector<36x64xf32>
    %200 = arith.mulf %197, %199 : vector<36x64xf32>
    %c3_222 = arith.constant 3 : index
    %c0_223 = arith.constant 0 : index
    %201 = vector.load %arg6[%c3_222, %c0_223] : memref<4x64xf32, #tpu.memory_space<vmem>>, vector<1x64xf32>
    %202 = vector.broadcast %201 : vector<1x64xf32> to vector<36x64xf32>
    %203 = arith.addf %200, %202 : vector<36x64xf32>
    %204 = vector.extract_strided_slice %203 {offsets = [0, 0], sizes = [9, 64], strides = [1, 1]} : vector<36x64xf32> to vector<9x64xf32>
    %205 = vector.extract_strided_slice %203 {offsets = [9, 0], sizes = [9, 64], strides = [1, 1]} : vector<36x64xf32> to vector<9x64xf32>
    %206 = vector.extract_strided_slice %203 {offsets = [18, 0], sizes = [9, 64], strides = [1, 1]} : vector<36x64xf32> to vector<9x64xf32>
    %207 = vector.extract_strided_slice %203 {offsets = [27, 0], sizes = [9, 64], strides = [1, 1]} : vector<36x64xf32> to vector<9x64xf32>
    %208 = tpu.concatenate %204, %205, %206, %207 in 1 : vector<9x64xf32>, vector<9x64xf32>, vector<9x64xf32>, vector<9x64xf32> -> vector<9x256xf32>
    %c0_224 = arith.constant 0 : index
    %c0_225 = arith.constant 0 : index
    %209 = vector.load %arg8[%c0_224, %c0_225] : memref<9x256xf32, #tpu.memory_space<vmem>>, vector<9x256xf32>
    tpu.vector_store %arg8[%c0_224, %c0_225], %208 {strides = array<i32>} : memref<9x256xf32, #tpu.memory_space<vmem>>, vector<9x256xf32>,
    return
  }
  func.func @transform_0(%arg0: i32) -> (i32, i32, i32, i32) {
    %c0_i32 = arith.constant 0 : i32
    %c0_i32_0 = arith.constant 0 : i32
    %c0_i32_1 = arith.constant 0 : i32
    %c0_i32_2 = arith.constant 0 : i32
    return %arg0, %c0_i32, %c0_i32_0, %c0_i32_1 : i32, i32, i32, i32
  }
  func.func @transform_1(%arg0: i32) -> (i32, i32) {
    %c0_i32 = arith.constant 0 : i32
    %c0_i32_0 = arith.constant 0 : i32
    %c0_i32_1 = arith.constant 0 : i32
    return %c0_i32, %c0_i32_0 : i32, i32
  }
  func.func @transform_2(%arg0: i32) -> (i32, i32) {
    %c0_i32 = arith.constant 0 : i32
    %c0_i32_0 = arith.constant 0 : i32
    %c0_i32_1 = arith.constant 0 : i32
    return %c0_i32, %c0_i32_0 : i32, i32
  }
  func.func @transform_3(%arg0: i32) -> (i32, i32) {
    %c0_i32 = arith.constant 0 : i32
    %c0_i32_0 = arith.constant 0 : i32
    %c0_i32_1 = arith.constant 0 : i32
    return %c0_i32, %c0_i32_0 : i32, i32
  }
  func.func @transform_4(%arg0: i32) -> (i32, i32) {
    %c0_i32 = arith.constant 0 : i32
    %c0_i32_0 = arith.constant 0 : i32
    %c0_i32_1 = arith.constant 0 : i32
    return %c0_i32, %c0_i32_0 : i32, i32
  }
  func.func @transform_5(%arg0: i32) -> (i32, i32) {
    %c0_i32 = arith.constant 0 : i32
    %c0_i32_0 = arith.constant 0 : i32
    %c0_i32_1 = arith.constant 0 : i32
    return %c0_i32, %c0_i32_0 : i32, i32
  }
  func.func @transform_6(%arg0: i32) -> (i32, i32) {
    %c0_i32 = arith.constant 0 : i32
    %c0_i32_0 = arith.constant 0 : i32
    %c0_i32_1 = arith.constant 0 : i32
    return %c0_i32, %c0_i32_0 : i32, i32
  }
  func.func @transform_7(%arg0: i32) -> (i32, i32) {
    %c0_i32 = arith.constant 0 : i32
    %c0_i32_0 = arith.constant 0 : i32
    return %c0_i32, %arg0 : i32, i32
  }
}

</mosaic_0001>

<llo_original>
// kernel: tpu_custom_call.1
$region0: #{tpu_custom_call.1}
  #allocation0 [shape = 'u32[]', space=smem, size = 0x4, offset = 0x4, fixed_abs, tag = 'smem constant byte address 0x4 - core index']
  #allocation1 [shape = 'u32[144,128]{1,0:T(1,128)}', space=vmem, size = 0x12000, scoped, tag = 'internal scratch']
  %s0 = inlined_call_operand.vmem [shape: f32[8,2,4,64], index: 0, kind: input, shape index: {}]
  %s1 = inlined_call_operand.vmem [shape: f32[30,52], index: 1, kind: input, shape index: {}]
  %s2 = inlined_call_operand.vmem [shape: f32[30,2], index: 2, kind: input, shape index: {}]
  %s3 = inlined_call_operand.vmem [shape: f32[70,64], index: 3, kind: input, shape index: {}]
  %s4 = inlined_call_operand.vmem [shape: f32[320,64], index: 4, kind: input, shape index: {}]
  %s5 = inlined_call_operand.vmem [shape: f32[4,64], index: 5, kind: input, shape index: {}]
  %s6 = inlined_call_operand.vmem [shape: f32[230,76], index: 6, kind: input, shape index: {}]
  %s7 = inlined_call_operand.hbm [shape: f32[9,512], index: 7, kind: output, shape index: {}]
  %s8 = sld [smem:[#allocation0]]
  $region61: #{tpu_custom_call.1} parent=0
    _
  %s10 = ssub.s32 1, %s8
  %s11 = scalar_select 0, %s10, %s8
  $region1: #{tpu_custom_call.1} parent=0
    #allocation2 [shape = 'u8[32768]{0}', space=vmem, size = 0x8000, scoped, tag = 'output window, operand 0']
    #allocation3 [shape = 's32[2]{0}', space=sflag, size = 0x8, scoped, tag = 'scoped memory for tpu_custom_call.1']
    %12 = vsyncpa [#allocation3], 0
    %s13 = scalar_lea.sflag [#allocation3], 1
    %14 = vsyncpa %s13, 0
    loop: start=0, step=1, limit=4
    $region2: #{tpu_custom_call.1} parent=1 // loop_pre_header
      _
    $region3: #{tpu_custom_call.1} parent=1 // loop_header
      %s16 = sphi 0, %s20
      %p17 = scmp.ge.s32.totalorder %s16, 4
      %s26 = sphi 0, %s28
      %s29 = sphi 0, %s26
      %s30 = sphi 0, %s29
      %s46 = sphi 0, %s30
      %s50 = sphi 0, %s50
      %s52 = sphi 0, %s50
      %s53 = sphi 0, %s52
      %s67 = sphi 0, %s53
      %s71 = sphi 0, %s71
      %s73 = sphi 0, %s71
      %s74 = sphi 0, %s73
      %s88 = sphi 0, %s74
      %s92 = sphi 0, %s92
      %s94 = sphi 0, %s92
      %s95 = sphi 0, %s94
      %s109 = sphi 0, %s95
      %s113 = sphi 0, %s113
      %s115 = sphi 0, %s113
      %s116 = sphi 0, %s115
      %s130 = sphi 0, %s116
      %s134 = sphi 0, %s134
      %s136 = sphi 0, %s134
      %s137 = sphi 0, %s136
      %s151 = sphi 0, %s137
      %s155 = sphi 0, %s155
      %s157 = sphi 0, %s155
      %s158 = sphi 0, %s157
      %s172 = sphi 0, %s158
      %s178 = sphi 0, %s180
      %s181 = sphi 0, %s178
      %s182 = sphi 0, %s181
      %s198 = sphi 0, %s182
    $region4: #{tpu_custom_call.1} parent=1 // loop_header_branch
      %19 = sbr.rel (%p17) target = $region8
    $region5: #{tpu_custom_call.1} parent=1 // loop_body
      %s21 = ssub.s32 %s16, 1
      %s22 = ssub.s32 %s16, 2
      %s23 = sadd.s32 %s16, 1
      %s24 = ssub.s32 %s16, %s23
      %p25 = scmp.eq.s32.totalorder %s24, 0
      %s27 = sadd.s32 %s26, 1
      %s28 = scalar_select %p25, %s26, %s27
      %p31 = pneg %p25
      %p32 = scmp.eq.s32.totalorder %s16, 1
      %p33 = por %p31, %p32
      %p34 = scmp.ne.s32.totalorder %s26, %s29
      %p35 = scmp.eq.s32.totalorder %s16, 0
      %p36 = por %p34, %p35
      %p37 = scmp.ne.s32.totalorder %s26, %s29
      %p38 = scmp.eq.s32.totalorder %s21, 1
      %p39 = por %p37, %p38
      %p40 = scmp.ne.s32.totalorder %s29, %s30
      %p41 = scmp.eq.s32.totalorder %s21, 0
      %p42 = por %p40, %p41
      %p43 = scmp.ne.s32.totalorder %s29, %s30
      %p44 = scmp.eq.s32.totalorder %s22, 1
      %p45 = por %p43, %p44
      %p47 = scmp.ne.s32.totalorder %s30, %s46
      %p48 = scmp.eq.s32.totalorder %s22, 0
      %p49 = por %p47, %p48
      %s51 = sadd.s32 %s50, 1
      %p54 = scmp.eq.s32.totalorder %s16, 1
      %p55 = scmp.ne.s32.totalorder %s50, %s52
      %p56 = scmp.eq.s32.totalorder %s16, 0
      %p57 = por %p55, %p56
      %p58 = scmp.ne.s32.totalorder %s50, %s52
      %p59 = scmp.eq.s32.totalorder %s21, 1
      %p60 = por %p58, %p59
      %p61 = scmp.ne.s32.totalorder %s52, %s53
      %p62 = scmp.eq.s32.totalorder %s21, 0
      %p63 = por %p61, %p62
      %p64 = scmp.ne.s32.totalorder %s52, %s53
      %p65 = scmp.eq.s32.totalorder %s22, 1
      %p66 = por %p64, %p65
      %p68 = scmp.ne.s32.totalorder %s53, %s67
      %p69 = scmp.eq.s32.totalorder %s22, 0
      %p70 = por %p68, %p69
      %s72 = sadd.s32 %s71, 1
      %p75 = scmp.eq.s32.totalorder %s16, 1
      %p76 = scmp.ne.s32.totalorder %s71, %s73
      %p77 = scmp.eq.s32.totalorder %s16, 0
      %p78 = por %p76, %p77
      %p79 = scmp.ne.s32.totalorder %s71, %s73
      %p80 = scmp.eq.s32.totalorder %s21, 1
      %p81 = por %p79, %p80
      %p82 = scmp.ne.s32.totalorder %s73, %s74
      %p83 = scmp.eq.s32.totalorder %s21, 0
      %p84 = por %p82, %p83
      %p85 = scmp.ne.s32.totalorder %s73, %s74
      %p86 = scmp.eq.s32.totalorder %s22, 1
      %p87 = por %p85, %p86
      %p89 = scmp.ne.s32.totalorder %s74, %s88
      %p90 = scmp.eq.s32.totalorder %s22, 0
      %p91 = por %p89, %p90
      %s93 = sadd.s32 %s92, 1
      %p96 = scmp.eq.s32.totalorder %s16, 1
      %p97 = scmp.ne.s32.totalorder %s92, %s94
      %p98 = scmp.eq.s32.totalorder %s16, 0
      %p99 = por %p97, %p98
      %p100 = scmp.ne.s32.totalorder %s92, %s94
      %p101 = scmp.eq.s32.totalorder %s21, 1
      %p102 = por %p100, %p101
      %p103 = scmp.ne.s32.totalorder %s94, %s95
      %p104 = scmp.eq.s32.totalorder %s21, 0
      %p105 = por %p103, %p104
      %p106 = scmp.ne.s32.totalorder %s94, %s95
      %p107 = scmp.eq.s32.totalorder %s22, 1
      %p108 = por %p106, %p107
      %p110 = scmp.ne.s32.totalorder %s95, %s109
      %p111 = scmp.eq.s32.totalorder %s22, 0
      %p112 = por %p110, %p111
      %s114 = sadd.s32 %s113, 1
      %p117 = scmp.eq.s32.totalorder %s16, 1
      %p118 = scmp.ne.s32.totalorder %s113, %s115
      %p119 = scmp.eq.s32.totalorder %s16, 0
      %p120 = por %p118, %p119
      %p121 = scmp.ne.s32.totalorder %s113, %s115
      %p122 = scmp.eq.s32.totalorder %s21, 1
      %p123 = por %p121, %p122
      %p124 = scmp.ne.s32.totalorder %s115, %s116
      %p125 = scmp.eq.s32.totalorder %s21, 0
      %p126 = por %p124, %p125
      %p127 = scmp.ne.s32.totalorder %s115, %s116
      %p128 = scmp.eq.s32.totalorder %s22, 1
      %p129 = por %p127, %p128
      %p131 = scmp.ne.s32.totalorder %s116, %s130
      %p132 = scmp.eq.s32.totalorder %s22, 0
      %p133 = por %p131, %p132
      %s135 = sadd.s32 %s134, 1
      %p138 = scmp.eq.s32.totalorder %s16, 1
      %p139 = scmp.ne.s32.totalorder %s134, %s136
      %p140 = scmp.eq.s32.totalorder %s16, 0
      %p141 = por %p139, %p140
      %p142 = scmp.ne.s32.totalorder %s134, %s136
      %p143 = scmp.eq.s32.totalorder %s21, 1
      %p144 = por %p142, %p143
      %p145 = scmp.ne.s32.totalorder %s136, %s137
      %p146 = scmp.eq.s32.totalorder %s21, 0
      %p147 = por %p145, %p146
      %p148 = scmp.ne.s32.totalorder %s136, %s137
      %p149 = scmp.eq.s32.totalorder %s22, 1
      %p150 = por %p148, %p149
      %p152 = scmp.ne.s32.totalorder %s137, %s151
      %p153 = scmp.eq.s32.totalorder %s22, 0
      %p154 = por %p152, %p153
      %s156 = sadd.s32 %s155, 1
      %p159 = scmp.eq.s32.totalorder %s16, 1
      %p160 = scmp.ne.s32.totalorder %s155, %s157
      %p161 = scmp.eq.s32.totalorder %s16, 0
      %p162 = por %p160, %p161
      %p163 = scmp.ne.s32.totalorder %s155, %s157
      %p164 = scmp.eq.s32.totalorder %s21, 1
      %p165 = por %p163, %p164
      %p166 = scmp.ne.s32.totalorder %s157, %s158
      %p167 = scmp.eq.s32.totalorder %s21, 0
      %p168 = por %p166, %p167
      %p169 = scmp.ne.s32.totalorder %s157, %s158
      %p170 = scmp.eq.s32.totalorder %s22, 1
      %p171 = por %p169, %p170
      %p173 = scmp.ne.s32.totalorder %s158, %s172
      %p174 = scmp.eq.s32.totalorder %s22, 0
      %p175 = por %p173, %p174
      %s176 = ssub.s32 %s16, %s23
      %p177 = scmp.eq.s32.totalorder %s176, 0
      %s179 = sadd.s32 %s178, 1
      %s180 = scalar_select %p177, %s178, %s179
      %p183 = pneg %p177
      %p184 = scmp.eq.s32.totalorder %s16, 1
      %p185 = por %p183, %p184
      %p186 = scmp.ne.s32.totalorder %s178, %s181
      %p187 = scmp.eq.s32.totalorder %s16, 0
      %p188 = por %p186, %p187
      %p189 = scmp.ne.s32.totalorder %s178, %s181
      %p190 = scmp.eq.s32.totalorder %s21, 1
      %p191 = por %p189, %p190
      %p192 = scmp.ne.s32.totalorder %s181, %s182
      %p193 = scmp.eq.s32.totalorder %s21, 0
      %p194 = por %p192, %p193
      %p195 = scmp.ne.s32.totalorder %s181, %s182
      %p196 = scmp.eq.s32.totalorder %s22, 1
      %p197 = por %p195, %p196
      %p199 = scmp.ne.s32.totalorder %s182, %s198
      %p200 = scmp.eq.s32.totalorder %s22, 0
      %p201 = por %p199, %p200
      %p202 = scmp.le.s32.totalorder 1, %s16
      %p203 = scmp.lt.s32.totalorder %s16, 3
      %p204 = pnand %p202, %p203
      %p205 = pneg %p204
      // Predicated region
      $region9: #{tpu_custom_call.1} parent=5 // pred_check
        _
      $region10: #{tpu_custom_call.1} parent=5 // pred_check_branch
        %207 = sbr.rel (%p204) target = $region12
      $region11: #{tpu_custom_call.1} parent=5 // pred_region
        %s208 = ssub.s32 %s16, 1
        // Predicated region
        $region13: #{tpu_custom_call.1} parent=11 // pred_check
          %p209 = pneg %p63
        $region14: #{tpu_custom_call.1} parent=11 // pred_check_branch
          %211 = sbr.rel (%p209) target = $region16
        $region15: #{tpu_custom_call.1} parent=11 // pred_region
          _
        $region16: #{tpu_custom_call.1} parent=11 // pred_fallthru
          _
        // Predicated region
        $region17: #{tpu_custom_call.1} parent=11 // pred_check
          %p212 = pneg %p84
        $region18: #{tpu_custom_call.1} parent=11 // pred_check_branch
          %214 = sbr.rel (%p212) target = $region20
        $region19: #{tpu_custom_call.1} parent=11 // pred_region
          _
        $region20: #{tpu_custom_call.1} parent=11 // pred_fallthru
          _
        // Predicated region
        $region21: #{tpu_custom_call.1} parent=11 // pred_check
          %p215 = pneg %p105
        $region22: #{tpu_custom_call.1} parent=11 // pred_check_branch
          %217 = sbr.rel (%p215) target = $region24
        $region23: #{tpu_custom_call.1} parent=11 // pred_region
          _
        $region24: #{tpu_custom_call.1} parent=11 // pred_fallthru
          _
        // Predicated region
        $region25: #{tpu_custom_call.1} parent=11 // pred_check
          %p218 = pneg %p126
        $region26: #{tpu_custom_call.1} parent=11 // pred_check_branch
          %220 = sbr.rel (%p218) target = $region28
        $region27: #{tpu_custom_call.1} parent=11 // pred_region
          _
        $region28: #{tpu_custom_call.1} parent=11 // pred_fallthru
          _
        // Predicated region
        $region29: #{tpu_custom_call.1} parent=11 // pred_check
          %p221 = pneg %p147
        $region30: #{tpu_custom_call.1} parent=11 // pred_check_branch
          %223 = sbr.rel (%p221) target = $region32
        $region31: #{tpu_custom_call.1} parent=11 // pred_region
          _
        $region32: #{tpu_custom_call.1} parent=11 // pred_fallthru
          _
        // Predicated region
        $region33: #{tpu_custom_call.1} parent=11 // pred_check
          %p224 = pneg %p168
        $region34: #{tpu_custom_call.1} parent=11 // pred_check_branch
          %226 = sbr.rel (%p224) target = $region36
        $region35: #{tpu_custom_call.1} parent=11 // pred_region
          _
        $region36: #{tpu_custom_call.1} parent=11 // pred_fallthru
          _
      $region12: #{tpu_custom_call.1} parent=5 // pred_fallthru
        _
      %p227 = scmp.lt.s32.totalorder %s16, 2
      // Predicated region
      $region37: #{tpu_custom_call.1} parent=5 // pred_check
        %p228 = pneg %p227
      $region38: #{tpu_custom_call.1} parent=5 // pred_check_branch
        %230 = sbr.rel (%p228) target = $region40
      $region39: #{tpu_custom_call.1} parent=5 // pred_region
        // Predicated region
        $region41: #{tpu_custom_call.1} parent=39 // pred_check
          %p231 = pneg %p36
        $region42: #{tpu_custom_call.1} parent=39 // pred_check_branch
          %233 = sbr.rel (%p231) target = $region44
        $region43: #{tpu_custom_call.1} parent=39 // pred_region
          %s234 = smul.u32 4, %s16
          %p235 = scmp.lt.s32.totalorder %s234, 7
          %s236 = scalar_select %p235, %s234, 7
          %s237 = smul.addr %s236, 2
          %s238 = smul.addr %s237, 4
          %s239 = scalar_lea.vmem %s0, %s238
          %s240 = smul.u32 4, %s16
        $region44: #{tpu_custom_call.1} parent=39 // pred_fallthru
          _
      $region40: #{tpu_custom_call.1} parent=5 // pred_fallthru
        _
      %p241 = scmp.le.s32.totalorder 1, %s16
      %p242 = scmp.lt.s32.totalorder %s16, 3
      %p243 = pnand %p241, %p242
      %p244 = pneg %p243
      // Predicated region
      $region45: #{tpu_custom_call.1} parent=5 // pred_check
        _
      $region46: #{tpu_custom_call.1} parent=5 // pred_check_branch
        %246 = sbr.rel (%p243) target = $region48
      $region47: #{tpu_custom_call.1} parent=5 // pred_region
        %s247 = ssub.s32 %s16, 1
        %s248 = smul.u32 4, %s21
        %p249 = scmp.lt.s32.totalorder %s248, 7
        %s250 = scalar_select %p249, %s248, 7
        %s251 = smul.addr %s250, 2
        %s252 = smul.addr %s251, 4
        %s253 = scalar_lea.vmem %s0, %s252
        %p254 = pneg %p42
        %p255 = pneg %p39
        %p256 = pneg %p63
        %p257 = pneg %p60
        %p258 = pneg %p84
        %p259 = pneg %p81
        %p260 = pneg %p105
        %p261 = pneg %p102
        %p262 = pneg %p126
        %p263 = pneg %p123
        %p264 = pneg %p147
        %p265 = pneg %p144
        %p266 = pneg %p168
        %p267 = pneg %p165
        %p268 = pneg %p194
        %p269 = pneg %p191
        %s270 = sand.u32 %s181, 1
        %s271 = scalar_lea.sflag [#allocation3], %s270
        %s272 = sand.u32 %s181, 1
        %s273 = smul.addr %s272, 32
        %s274 = scalar_lea.vmem [#allocation2], %s273
        %s275 = smul.u32 4, %s21
        %p276 = scmp.lt.s32.totalorder %s275, 7
        %s277 = scalar_select %p276, %s275, 7
        %s278 = smul.addr %s277, 2
        %s279 = smul.addr %s278, 4
        %s280 = scalar_lea.vmem %s0, %s279
        %s281 = smul.u32 4, %s21
        %s282 = smul.u32 2, %s21
        %v283 = vld [vmem:[%s280] sm:$0xf]
        %s284 = scalar_lea.vmem %s280, 4
        %v285 = vld [vmem:[%s284] sm:$0xf]
        %v287 = vrot.slane %v285, 4
        %290 = vrot.lane.b32.xlu0 %v283, 127
        %v291 = vpop.permute.xlu0 %290
        %293 = vrot.lane.b32.xlu0 %v287, 127
        %v294 = vpop.permute.xlu0 %293
        %296 = vrot.lane.b32.xlu0 %v283, 126
        %v297 = vpop.permute.xlu0 %296
        %299 = vrot.lane.b32.xlu0 %v287, 126
        %v300 = vpop.permute.xlu0 %299
        %302 = vrot.lane.b32.xlu0 %v283, 125
        %v303 = vpop.permute.xlu0 %302
        %305 = vrot.lane.b32.xlu0 %v287, 125
        %v306 = vpop.permute.xlu0 %305
        %308 = vrot.lane.b32.xlu0 %v283, 124
        %v309 = vpop.permute.xlu0 %308
        %311 = vrot.lane.b32.xlu0 %v287, 124
        %v312 = vpop.permute.xlu0 %311
        %314 = vrot.lane.b32.xlu0 %v283, 123
        %v315 = vpop.permute.xlu0 %314
        %317 = vrot.lane.b32.xlu0 %v287, 123
        %v318 = vpop.permute.xlu0 %317
        %320 = vrot.lane.b32.xlu0 %v283, 122
        %v321 = vpop.permute.xlu0 %320
        %vm323 = vcmask 1043456
        %v324 = vsel %vm323, %v283, %v287
        %v325 = vsel %vm323, %v291, %v294
        %v326 = vsel %vm323, %v297, %v300
        %v327 = vsel %vm323, %v303, %v306
        %v328 = vsel %vm323, %v309, %v312
        %v329 = vsel %vm323, %v315, %v318
        %s330 = scalar_lea.vmem %s280, 8
        %v331 = vld [vmem:[%s330] sm:$0xf]
        %s332 = scalar_lea.vmem %s280, 12
        %v333 = vld [vmem:[%s332] sm:$0xf]
        %v335 = vrot.slane %v333, 4
        %338 = vrot.lane.b32.xlu0 %v331, 127
        %v339 = vpop.permute.xlu0 %338
        %341 = vrot.lane.b32.xlu0 %v335, 127
        %v342 = vpop.permute.xlu0 %341
        %344 = vrot.lane.b32.xlu0 %v331, 126
        %v345 = vpop.permute.xlu0 %344
        %347 = vrot.lane.b32.xlu0 %v335, 126
        %v348 = vpop.permute.xlu0 %347
        %350 = vrot.lane.b32.xlu0 %v331, 125
        %v351 = vpop.permute.xlu0 %350
        %353 = vrot.lane.b32.xlu0 %v335, 125
        %v354 = vpop.permute.xlu0 %353
        %356 = vrot.lane.b32.xlu0 %v331, 124
        %v357 = vpop.permute.xlu0 %356
        %359 = vrot.lane.b32.xlu0 %v335, 124
        %v360 = vpop.permute.xlu0 %359
        %362 = vrot.lane.b32.xlu0 %v331, 123
        %v363 = vpop.permute.xlu0 %362
        %365 = vrot.lane.b32.xlu0 %v335, 123
        %v366 = vpop.permute.xlu0 %365
        %368 = vrot.lane.b32.xlu0 %v331, 122
        %v369 = vpop.permute.xlu0 %368
        %v370 = vsel %vm323, %v331, %v335
        %v371 = vsel %vm323, %v339, %v342
        %v372 = vsel %vm323, %v345, %v348
        %v373 = vsel %vm323, %v351, %v354
        %v374 = vsel %vm323, %v357, %v360
        %v375 = vsel %vm323, %v363, %v366
        %s376 = scalar_lea.vmem %s280, 16
        %v377 = vld [vmem:[%s376] sm:$0xf]
        %s378 = scalar_lea.vmem %s280, 20
        %v379 = vld [vmem:[%s378] sm:$0xf]
        %v381 = vrot.slane %v379, 4
        %384 = vrot.lane.b32.xlu0 %v377, 127
        %v385 = vpop.permute.xlu0 %384
        %387 = vrot.lane.b32.xlu0 %v381, 127
        %v388 = vpop.permute.xlu0 %387
        %390 = vrot.lane.b32.xlu0 %v377, 126
        %v391 = vpop.permute.xlu0 %390
        %393 = vrot.lane.b32.xlu0 %v381, 126
        %v394 = vpop.permute.xlu0 %393
        %396 = vrot.lane.b32.xlu0 %v377, 125
        %v397 = vpop.permute.xlu0 %396
        %399 = vrot.lane.b32.xlu0 %v381, 125
        %v400 = vpop.permute.xlu0 %399
        %402 = vrot.lane.b32.xlu0 %v377, 124
        %v403 = vpop.permute.xlu0 %402
        %405 = vrot.lane.b32.xlu0 %v381, 124
        %v406 = vpop.permute.xlu0 %405
        %408 = vrot.lane.b32.xlu0 %v377, 123
        %v409 = vpop.permute.xlu0 %408
        %411 = vrot.lane.b32.xlu0 %v381, 123
        %v412 = vpop.permute.xlu0 %411
        %414 = vrot.lane.b32.xlu0 %v377, 122
        %v415 = vpop.permute.xlu0 %414
        %v416 = vsel %vm323, %v377, %v381
        %v417 = vsel %vm323, %v385, %v388
        %v418 = vsel %vm323, %v391, %v394
        %v419 = vsel %vm323, %v397, %v400
        %v420 = vsel %vm323, %v403, %v406
        %v421 = vsel %vm323, %v409, %v412
        %s422 = scalar_lea.vmem %s280, 24
        %v423 = vld [vmem:[%s422] sm:$0xf]
        %s424 = scalar_lea.vmem %s280, 28
        %v425 = vld [vmem:[%s424] sm:$0xf]
        %v427 = vrot.slane %v425, 4
        %430 = vrot.lane.b32.xlu0 %v423, 127
        %v431 = vpop.permute.xlu0 %430
        %433 = vrot.lane.b32.xlu0 %v427, 127
        %v434 = vpop.permute.xlu0 %433
        %436 = vrot.lane.b32.xlu0 %v423, 126
        %v437 = vpop.permute.xlu0 %436
        %439 = vrot.lane.b32.xlu0 %v427, 126
        %v440 = vpop.permute.xlu0 %439
        %442 = vrot.lane.b32.xlu0 %v423, 125
        %v443 = vpop.permute.xlu0 %442
        %445 = vrot.lane.b32.xlu0 %v427, 125
        %v446 = vpop.permute.xlu0 %445
        %448 = vrot.lane.b32.xlu0 %v423, 124
        %v449 = vpop.permute.xlu0 %448
        %451 = vrot.lane.b32.xlu0 %v427, 124
        %v452 = vpop.permute.xlu0 %451
        %454 = vrot.lane.b32.xlu0 %v423, 123
        %v455 = vpop.permute.xlu0 %454
        %457 = vrot.lane.b32.xlu0 %v427, 123
        %v458 = vpop.permute.xlu0 %457
        %460 = vrot.lane.b32.xlu0 %v423, 122
        %v461 = vpop.permute.xlu0 %460
        %v462 = vsel %vm323, %v423, %v427
        %v463 = vsel %vm323, %v431, %v434
        %v464 = vsel %vm323, %v437, %v440
        %v465 = vsel %vm323, %v443, %v446
        %v466 = vsel %vm323, %v449, %v452
        %v467 = vsel %vm323, %v455, %v458
        %474 = vrot.lane.b32.xlu0 %v370, 58
        %v475 = vpop.permute.xlu0 %474
        %476 = vrot.lane.b32.xlu0 %v371, 58
        %v477 = vpop.permute.xlu0 %476
        %478 = vrot.lane.b32.xlu0 %v372, 58
        %v479 = vpop.permute.xlu0 %478
        %480 = vrot.lane.b32.xlu0 %v373, 58
        %v481 = vpop.permute.xlu0 %480
        %482 = vrot.lane.b32.xlu0 %v374, 58
        %v483 = vpop.permute.xlu0 %482
        %484 = vrot.lane.b32.xlu0 %v375, 58
        %v485 = vpop.permute.xlu0 %484
        %486 = vrot.lane.b32.xlu0 %v369, 58
        %v487 = vpop.permute.xlu0 %486
        %501 = vrot.lane.b32.xlu0 %v416, 116
        %v502 = vpop.permute.xlu0 %501
        %503 = vrot.lane.b32.xlu0 %v417, 116
        %v504 = vpop.permute.xlu0 %503
        %505 = vrot.lane.b32.xlu0 %v418, 116
        %v506 = vpop.permute.xlu0 %505
        %507 = vrot.lane.b32.xlu0 %v419, 116
        %v508 = vpop.permute.xlu0 %507
        %509 = vrot.lane.b32.xlu0 %v420, 116
        %v510 = vpop.permute.xlu0 %509
        %511 = vrot.lane.b32.xlu0 %v421, 116
        %v512 = vpop.permute.xlu0 %511
        %513 = vrot.lane.b32.xlu0 %v415, 116
        %v514 = vpop.permute.xlu0 %513
        %528 = vrot.lane.b32.xlu0 %v462, 46
        %v529 = vpop.permute.xlu0 %528
        %530 = vrot.lane.b32.xlu0 %v463, 46
        %v531 = vpop.permute.xlu0 %530
        %532 = vrot.lane.b32.xlu0 %v464, 46
        %v533 = vpop.permute.xlu0 %532
        %534 = vrot.lane.b32.xlu0 %v465, 46
        %v535 = vpop.permute.xlu0 %534
        %536 = vrot.lane.b32.xlu0 %v466, 46
        %v537 = vpop.permute.xlu0 %536
        %538 = vrot.lane.b32.xlu0 %v467, 46
        %v539 = vpop.permute.xlu0 %538
        %540 = vrot.lane.b32.xlu0 %v461, 46
        %v541 = vpop.permute.xlu0 %540
        %vm549 = vcmask 474112
        %v550 = vsel %vm549, %v324, %v475
        %v551 = vsel %vm549, %v325, %v477
        %v552 = vsel %vm549, %v326, %v479
        %v553 = vsel %vm549, %v327, %v481
        %v554 = vsel %vm549, %v328, %v483
        %v555 = vsel %vm549, %v329, %v485
        %v556 = vsel %vm549, %v321, %v487
        %vm557 = vcmask 949248
        %v558 = vsel %vm557, %v550, %v502
        %v559 = vsel %vm557, %v551, %v504
        %v560 = vsel %vm557, %v552, %v506
        %v561 = vsel %vm557, %v553, %v508
        %v562 = vsel %vm557, %v554, %v510
        %v563 = vsel %vm557, %v555, %v512
        %v564 = vsel %vm557, %v556, %v514
        %vm565 = vcmask 375808
        %v566 = vsel %vm565, %v502, %v529
        %v567 = vsel %vm565, %v504, %v531
        %v568 = vsel %vm565, %v506, %v533
        %v569 = vsel %vm565, %v508, %v535
        %v570 = vsel %vm565, %v510, %v537
        %v571 = vsel %vm565, %v512, %v539
        %v572 = vsel %vm565, %v514, %v541
        %v573 = vld [vmem:[%s1] sm:$0xff]
        %v574 = vld [vmem:[%s1 + $0x8] sm:$0xff]
        %v575 = vld [vmem:[%s1 + $0x10] sm:$0xff]
        %v576 = vld [vmem:[%s1 + $0x18] sm:$0x3f]
        %vm577 = vcmask 424960
        %v579 = vsel %vm577, %v573, 0
        %v582 = vsel %vm577, %v574, 0
        %v585 = vsel %vm577, %v575, 0
        %v588 = vsel %vm577, %v576, 0
        %v591 = vsel %vm323, %v564, 0
        %v594 = vsel %vm323, %v572, 0
        %596 = vmatprep.subr.mxu0 0.0
        %597 = vmatpush1.msra.mxu0 0.0
        %598 = vmatprep.subr.mxu0 0.0
        %599 = vmatpush1.msra.mxu0 0.0
        %600 = vmatprep.subr.mxu0 0.0
        %601 = vmatpush1.msra.mxu0 0.0
        %602 = vmatprep.subr.mxu0 0.0
        %603 = vmatpush1.msra.mxu0 0.0
        %604 = vmatprep.subr.mxu0 0.0
        %605 = vmatpush1.msra.mxu0 0.0
        %606 = vmatprep.subr.mxu0 0.0
        %607 = vmatpush1.msra.mxu0 0.0
        %608 = vmatprep.subr.mxu0 0.0
        %609 = vmatpush1.msra.mxu0 0.0
        %610 = vmatprep.subr.mxu0 0.0
        %611 = vmatpush1.msra.mxu0 0.0
        %612 = vmatprep.subr.mxu0 0.0
        %613 = vmatpush1.msra.mxu0 0.0
        %614 = vmatprep.subr.mxu0 %v594
        %615 = vmatpush1.msra.mxu0 %v591
        %616 = vmatprep.subr.mxu0 %v571
        %617 = vmatpush1.msra.mxu0 %v563
        %618 = vmatprep.subr.mxu0 %v570
        %619 = vmatpush1.msra.mxu0 %v562
        %620 = vmatprep.subr.mxu0 %v569
        %621 = vmatpush1.msra.mxu0 %v561
        %622 = vmatprep.subr.mxu0 %v568
        %623 = vmatpush1.msra.mxu0 %v560
        %624 = vmatprep.subr.mxu0 %v567
        %625 = vmatpush1.msra.mxu0 %v559
        %626 = vmatprep.subr.mxu0 %v566
        %627 = vmatpush1.msra.mxu0 %v558
        %628 = vmatprep.subr.mxu0 0.0
        %629 = vmatpush2.msra.mxu0 0.0
        %630 = vmatprep.subr.mxu0 0.0
        %631 = vmatpush2.msra.mxu0 0.0
        %632 = vmatprep.subr.mxu0 0.0
        %633 = vmatpush2.msra.mxu0 0.0
        %634 = vmatprep.subr.mxu0 0.0
        %635 = vmatpush2.msra.mxu0 0.0
        %636 = vmatprep.subr.mxu0 0.0
        %637 = vmatpush2.msra.mxu0 0.0
        %638 = vmatprep.subr.mxu0 0.0
        %639 = vmatpush2.msra.mxu0 0.0
        %640 = vmatprep.subr.mxu0 0.0
        %641 = vmatpush2.msra.mxu0 0.0
        %642 = vmatprep.subr.mxu0 0.0
        %643 = vmatpush2.msra.mxu0 0.0
        %644 = vmatprep.subr.mxu0 0.0
        %645 = vmatpush2.msra.mxu0 0.0
        %646 = vmatprep.subr.mxu0 0.0
        %647 = vmatpush2.msra.mxu0 0.0
        %648 = vmatprep.subr.mxu0 0.0
        %649 = vmatpush2.msra.mxu0 0.0
        %650 = vmatprep.subr.mxu0 0.0
        %651 = vmatpush2.msra.mxu0 0.0
        %652 = vmatprep.subr.mxu0 0.0
        %653 = vmatpush2.msra.mxu0 0.0
        %654 = vmatprep.subr.mxu0 0.0
        %655 = vmatpush2.msra.mxu0 0.0
        %656 = vmatprep.subr.mxu0 0.0
        %657 = vmatpush2.msra.mxu0 0.0
        %658 = vmatprep.subr.mxu0 0.0
        %659 = vmatpush2.msra.mxu0 0.0
        %660 = vmatprep.mubr.f32.mxu0 0.0
        %661 = vmatmul.mubr.f32.gmra.mxu0 %v579
        %v662 = vpop.f32.mrf.mxu0
        %v663 = vadd.f32 0.0, %v662
        %v664 = vpop.f32.mrf.mxu0
        %v665 = vadd.f32 0.0, %v664
        %666 = vmatprep.mubr.f32.mxu0 0.0
        %667 = vmatmul.mubr.f32.gmra.mxu0 %v582
        %v668 = vpop.f32.mrf.mxu0
        %v669 = vadd.f32 0.0, %v668
        %v670 = vpop.f32.mrf.mxu0
        %v671 = vadd.f32 0.0, %v670
        %672 = vmatprep.mubr.f32.mxu0 0.0
        %673 = vmatmul.mubr.f32.gmra.mxu0 %v585
        %v674 = vpop.f32.mrf.mxu0
        %v675 = vadd.f32 0.0, %v674
        %v676 = vpop.f32.mrf.mxu0
        %v677 = vadd.f32 0.0, %v676
        %678 = vmatprep.mubr.f32.mxu0 0.0
        %679 = vmatmul.mubr.f32.gmra.mxu0 %v588
        %v680 = vpop.f32.mrf.mxu0
        %v681 = vadd.f32 0.0, %v680
        %v682 = vpop.f32.mrf.mxu0
        %v683 = vadd.f32 0.0, %v682
        %684 = vdwg.mxu0
        %v685 = vld [vmem:[%s2] sm:$0xff]
        %v686 = vld [vmem:[%s2 + $0x8] sm:$0xff]
        %v687 = vld [vmem:[%s2 + $0x10] sm:$0xff]
        %v688 = vld [vmem:[%s2 + $0x18] sm:$0x3f]
        %690 = vset.pattern.permute.xlu0 0
        %691 = vperm.xlu0 %690, %v685
        %v692 = vpop.permute.xlu0 %691
        %695 = vset.pattern.permute.xlu0 0
        %696 = vperm.xlu0 %695, %v686
        %v697 = vpop.permute.xlu0 %696
        %700 = vset.pattern.permute.xlu0 0
        %701 = vperm.xlu0 %700, %v687
        %v702 = vpop.permute.xlu0 %701
        %705 = vset.pattern.permute.xlu0 0
        %706 = vperm.xlu0 %705, %v688
        %v707 = vpop.permute.xlu0 %706
        %v709 = vmul.f32 %v663, %v692
        %v710 = vmul.f32 %v665, %v692
        %v711 = vmul.f32 %v669, %v697
        %v712 = vmul.f32 %v671, %v697
        %v713 = vmul.f32 %v675, %v702
        %v714 = vmul.f32 %v677, %v702
        %v715 = vmul.f32 %v681, %v707
        %v716 = vmul.f32 %v683, %v707
        %717 = vset.pattern.permute.xlu0 1
        %718 = vperm.xlu0 %717, %v685
        %v719 = vpop.permute.xlu0 %718
        %721 = vset.pattern.permute.xlu0 1
        %722 = vperm.xlu0 %721, %v686
        %v723 = vpop.permute.xlu0 %722
        %725 = vset.pattern.permute.xlu0 1
        %726 = vperm.xlu0 %725, %v687
        %v727 = vpop.permute.xlu0 %726
        %729 = vset.pattern.permute.xlu0 1
        %730 = vperm.xlu0 %729, %v688
        %v731 = vpop.permute.xlu0 %730
        %v733 = vadd.f32 %v709, %v719
        %v734 = vadd.f32 %v710, %v719
        %v735 = vadd.f32 %v711, %v723
        %v736 = vadd.f32 %v712, %v723
        %v737 = vadd.f32 %v713, %v727
        %v738 = vadd.f32 %v714, %v727
        %v739 = vadd.f32 %v715, %v731
        %v740 = vadd.f32 %v716, %v731
        %vm745 = vcmask 1045504
        %v746 = vrot.slane %v735, 2
        %v747 = vrot.slane %v737, 2
        %v748 = vsel %vm745, %v746, %v747
        %v749 = vrot.slane %v736, 2
        %v750 = vrot.slane %v738, 2
        %v751 = vsel %vm745, %v749, %v750
        %v756 = vmax.f32 %v733, %v748
        %v757 = vmax.f32 %v734, %v751
        %v758 = vmax.f32 %v735, %v747
        %v759 = vmax.f32 %v736, %v750
        %v762 = vrot.slane %v737, 4
        %v763 = vrot.slane %v739, 4
        %v764 = vsel %vm323, %v762, %v763
        %v765 = vrot.slane %v738, 4
        %v766 = vrot.slane %v740, 4
        %v767 = vsel %vm323, %v765, %v766
        %v772 = vmax.f32 %v756, %v764
        %v773 = vmax.f32 %v757, %v767
        %v774 = vmax.f32 %v758, %v763
        %v775 = vmax.f32 %v759, %v766
        %780 = vrot.lane.b32.xlu0 %v772, 127
        %v781 = vpop.permute.xlu0 %780
        %782 = vrot.lane.b32.xlu0 %v773, 127
        %v783 = vpop.permute.xlu0 %782
        %784 = vrot.lane.b32.xlu0 %v774, 127
        %v785 = vpop.permute.xlu0 %784
        %786 = vrot.lane.b32.xlu0 %v775, 127
        %v787 = vpop.permute.xlu0 %786
        %vm788 = vcmask 1039360
        %v789 = vsel %vm788, %v781, %v783
        %v790 = vsel %vm788, %v785, %v787
        %v795 = vmax.f32 %v772, %v789
        %v796 = vmax.f32 %v773, %v783
        %v797 = vmax.f32 %v774, %v790
        %v798 = vmax.f32 %v775, %v787
        %799 = vrot.lane.b32.xlu0 %v772, 126
        %v800 = vpop.permute.xlu0 %799
        %801 = vrot.lane.b32.xlu0 %v773, 126
        %v802 = vpop.permute.xlu0 %801
        %803 = vrot.lane.b32.xlu0 %v774, 126
        %v804 = vpop.permute.xlu0 %803
        %805 = vrot.lane.b32.xlu0 %v775, 126
        %v806 = vpop.permute.xlu0 %805
        %vm807 = vcmask 1031168
        %v808 = vsel %vm807, %v800, %v802
        %v809 = vsel %vm807, %v804, %v806
        %v814 = vmax.f32 %v795, %v808
        %v815 = vmax.f32 %v796, %v802
        %v816 = vmax.f32 %v797, %v809
        %v817 = vmax.f32 %v798, %v806
        %v818 = vld [vmem:[%s6] sm:$0xff]
        %v819 = vld [vmem:[%s6 + $0x8] sm:$0xff]
        %v820 = vld [vmem:[%s6 + $0x10] sm:$0xff]
        %v821 = vld [vmem:[%s6 + $0x18] sm:$0xff]
        %v822 = vld [vmem:[%s6 + $0x20] sm:$0xff]
        %v823 = vld [vmem:[%s6 + $0x28] sm:$0xff]
        %v824 = vld [vmem:[%s6 + $0x30] sm:$0xff]
        %v825 = vld [vmem:[%s6 + $0x38] sm:$0xff]
        %v826 = vld [vmem:[%s6 + $0x40] sm:$0xff]
        %v827 = vld [vmem:[%s6 + $0x48] sm:$0xff]
        %v828 = vld [vmem:[%s6 + $0x50] sm:$0xff]
        %v829 = vld [vmem:[%s6 + $0x58] sm:$0xff]
        %v830 = vld [vmem:[%s6 + $0x60] sm:$0xff]
        %v831 = vld [vmem:[%s6 + $0x68] sm:$0xff]
        %v832 = vld [vmem:[%s6 + $0x70] sm:$0xff]
        %v833 = vld [vmem:[%s6 + $0x78] sm:$0xff]
        %v834 = vld [vmem:[%s6 + $0x80] sm:$0xff]
        %v835 = vld [vmem:[%s6 + $0x88] sm:$0xff]
        %v836 = vld [vmem:[%s6 + $0x90] sm:$0xff]
        %v837 = vld [vmem:[%s6 + $0x98] sm:$0xff]
        %v838 = vld [vmem:[%s6 + $0xa0] sm:$0xff]
        %v839 = vld [vmem:[%s6 + $0xa8] sm:$0xff]
        %v840 = vld [vmem:[%s6 + $0xb0] sm:$0xff]
        %v841 = vld [vmem:[%s6 + $0xb8] sm:$0xff]
        %v842 = vld [vmem:[%s6 + $0xc0] sm:$0xff]
        %v843 = vld [vmem:[%s6 + $0xc8] sm:$0xff]
        %v844 = vld [vmem:[%s6 + $0xd0] sm:$0xff]
        %v845 = vld [vmem:[%s6 + $0xd8] sm:$0xff]
        %v846 = vld [vmem:[%s6 + $0xe0] sm:$0x3f]
        %vm847 = vcmask 834560
        %v849 = vsel %vm847, %v815, 0
        %v852 = vsel %vm847, %v817, 0
        %v855 = vsel %vm745, %v846, 0
        %857 = vmatprep.subr.mxu0 0.0
        %858 = vmatpush1.msra.mxu0 %v833
        %859 = vmatprep.subr.mxu0 0.0
        %860 = vmatpush1.msra.mxu0 %v832
        %861 = vmatprep.subr.mxu0 0.0
        %862 = vmatpush1.msra.mxu0 %v831
        %863 = vmatprep.subr.mxu0 0.0
        %864 = vmatpush1.msra.mxu0 %v830
        %865 = vmatprep.subr.mxu0 0.0
        %866 = vmatpush1.msra.mxu0 %v829
        %867 = vmatprep.subr.mxu0 0.0
        %868 = vmatpush1.msra.mxu0 %v828
        %869 = vmatprep.subr.mxu0 0.0
        %870 = vmatpush1.msra.mxu0 %v827
        %871 = vmatprep.subr.mxu0 0.0
        %872 = vmatpush1.msra.mxu0 %v826
        %873 = vmatprep.subr.mxu0 0.0
        %874 = vmatpush1.msra.mxu0 %v825
        %875 = vmatprep.subr.mxu0 0.0
        %876 = vmatpush1.msra.mxu0 %v824
        %877 = vmatprep.subr.mxu0 0.0
        %878 = vmatpush1.msra.mxu0 %v823
        %879 = vmatprep.subr.mxu0 0.0
        %880 = vmatpush1.msra.mxu0 %v822
        %881 = vmatprep.subr.mxu0 0.0
        %882 = vmatpush1.msra.mxu0 %v821
        %883 = vmatprep.subr.mxu0 0.0
        %884 = vmatpush1.msra.mxu0 %v820
        %885 = vmatprep.subr.mxu0 0.0
        %886 = vmatpush1.msra.mxu0 %v819
        %887 = vmatprep.subr.mxu0 0.0
        %888 = vmatpush1.msra.mxu0 %v818
        %889 = vmatprep.subr.mxu0 0.0
        %890 = vmatpush2.msra.mxu0 0.0
        %891 = vmatprep.subr.mxu0 0.0
        %892 = vmatpush2.msra.mxu0 0.0
        %893 = vmatprep.subr.mxu0 0.0
        %894 = vmatpush2.msra.mxu0 0.0
        %895 = vmatprep.subr.mxu0 0.0
        %896 = vmatpush2.msra.mxu0 %v855
        %897 = vmatprep.subr.mxu0 0.0
        %898 = vmatpush2.msra.mxu0 %v845
        %899 = vmatprep.subr.mxu0 0.0
        %900 = vmatpush2.msra.mxu0 %v844
        %901 = vmatprep.subr.mxu0 0.0
        %902 = vmatpush2.msra.mxu0 %v843
        %903 = vmatprep.subr.mxu0 0.0
        %904 = vmatpush2.msra.mxu0 %v842
        %905 = vmatprep.subr.mxu0 0.0
        %906 = vmatpush2.msra.mxu0 %v841
        %907 = vmatprep.subr.mxu0 0.0
        %908 = vmatpush2.msra.mxu0 %v840
        %909 = vmatprep.subr.mxu0 0.0
        %910 = vmatpush2.msra.mxu0 %v839
        %911 = vmatprep.subr.mxu0 0.0
        %912 = vmatpush2.msra.mxu0 %v838
        %913 = vmatprep.subr.mxu0 0.0
        %914 = vmatpush2.msra.mxu0 %v837
        %915 = vmatprep.subr.mxu0 0.0
        %916 = vmatpush2.msra.mxu0 %v836
        %917 = vmatprep.subr.mxu0 0.0
        %918 = vmatpush2.msra.mxu0 %v835
        %919 = vmatprep.subr.mxu0 0.0
        %920 = vmatpush2.msra.mxu0 %v834
        %921 = vmatprep.mubr.f32.mxu0 %v849
        %922 = vmatmul.mubr.f32.gmra.mxu0 %v814
        %v923 = vpop.f32.mrf.mxu0
        %v924 = vadd.f32 0.0, %v923
        %v925 = vpop.f32.mrf.mxu0
        %926 = vmatprep.mubr.f32.mxu0 %v852
        %927 = vmatmul.mubr.f32.gmra.mxu0 %v816
        %v928 = vpop.f32.mrf.mxu0
        %v929 = vadd.f32 0.0, %v928
        %v930 = vpop.f32.mrf.mxu0
        %931 = vdwg.mxu0
        %932 = vxpose.xlu0.b32.start [1/16] %v924, 128
        %933 = vxpose.xlu0.b32.cont [2/16] %v929, 128
        %934 = vxpose.xlu0.b32.cont [3/16] 0.0, 128
        %935 = vxpose.xlu0.b32.cont [4/16] 0.0, 128
        %936 = vxpose.xlu0.b32.cont [5/16] 0.0, 128
        %937 = vxpose.xlu0.b32.cont [6/16] 0.0, 128
        %938 = vxpose.xlu0.b32.cont [7/16] 0.0, 128
        %939 = vxpose.xlu0.b32.cont [8/16] 0.0, 128
        %940 = vxpose.xlu0.b32.cont [9/16] 0.0, 128
        %941 = vxpose.xlu0.b32.cont [10/16] 0.0, 128
        %942 = vxpose.xlu0.b32.cont [11/16] 0.0, 128
        %943 = vxpose.xlu0.b32.cont [12/16] 0.0, 128
        %944 = vxpose.xlu0.b32.cont [13/16] 0.0, 128
        %945 = vxpose.xlu0.b32.cont [14/16] 0.0, 128
        %946 = vxpose.xlu0.b32.cont [15/16] 0.0, 128
        %947 = vxpose.xlu0.b32.end [16/16] 0.0, 128
        %v948 = vpop.trf.xlu0
        %v949 = vpop.trf.xlu0
        %v950 = vpop.trf.xlu0
        %v951 = vpop.trf.xlu0
        %v952 = vpop.trf.xlu0
        %v953 = vpop.trf.xlu0
        %v954 = vpop.trf.xlu0
        %v955 = vpop.trf.xlu0
        %v956 = vpop.trf.xlu0
        %v957 = vpop.trf.xlu0
        %v958 = vpop.trf.xlu0
        %v959 = vpop.trf.xlu0
        %v960 = vpop.trf.xlu0
        %v961 = vpop.trf.xlu0
        %v962 = vpop.trf.xlu0
        %v963 = vpop.trf.xlu0
        %vm966 = vcmask 1046528
        %v967 = vrot.slane %v948, 1
        %v968 = vrot.slane %v949, 1
        %v969 = vsel %vm966, %v967, %v968
        %970 = vrot.lane.b32.xlu0 %v969, 10
        %v971 = vpop.permute.xlu0 %970
        %972 = vrot.lane.b32.xlu0 %v968, 10
        %v973 = vpop.permute.xlu0 %972
        %v976 = vrot.slane %v948, 2
        %v977 = vrot.slane %v949, 2
        %v978 = vsel %vm745, %v976, %v977
        %979 = vrot.lane.b32.xlu0 %v978, 20
        %v980 = vpop.permute.xlu0 %979
        %981 = vrot.lane.b32.xlu0 %v977, 20
        %v982 = vpop.permute.xlu0 %981
        %vm985 = vcmask 1044480
        %v986 = vrot.slane %v948, 3
        %v987 = vrot.slane %v949, 3
        %v988 = vsel %vm985, %v986, %v987
        %989 = vrot.lane.b32.xlu0 %v988, 30
        %v990 = vpop.permute.xlu0 %989
        %991 = vrot.lane.b32.xlu0 %v987, 30
        %v992 = vpop.permute.xlu0 %991
        %v996 = vrot.slane %v948, 4
        %v997 = vrot.slane %v949, 4
        %v998 = vsel %vm323, %v996, %v997
        %v999 = vrot.slane %v950, 4
        %v1000 = vsel %vm323, %v997, %v999
        %1001 = vrot.lane.b32.xlu0 %v998, 40
        %v1002 = vpop.permute.xlu0 %1001
        %1003 = vrot.lane.b32.xlu0 %v1000, 40
        %v1004 = vpop.permute.xlu0 %1003
        %vm1007 = vcmask 1042432
        %v1008 = vrot.slane %v948, 5
        %v1009 = vrot.slane %v949, 5
        %v1010 = vsel %vm1007, %v1008, %v1009
        %v1011 = vrot.slane %v950, 5
        %v1012 = vsel %vm1007, %v1009, %v1011
        %1013 = vrot.lane.b32.xlu0 %v1010, 50
        %v1014 = vpop.permute.xlu0 %1013
        %1015 = vrot.lane.b32.xlu0 %v1012, 50
        %v1016 = vpop.permute.xlu0 %1015
        %vm1019 = vcmask 1041408
        %v1020 = vrot.slane %v948, 6
        %v1021 = vrot.slane %v949, 6
        %v1022 = vsel %vm1019, %v1020, %v1021
        %v1023 = vrot.slane %v950, 6
        %v1024 = vsel %vm1019, %v1021, %v1023
        %1025 = vrot.lane.b32.xlu0 %v1022, 60
        %v1026 = vpop.permute.xlu0 %1025
        %1027 = vrot.lane.b32.xlu0 %v1024, 60
        %v1028 = vpop.permute.xlu0 %1027
        %vm1031 = vcmask 80896
        %v1032 = vsel %vm1031, %v948, %v971
        %v1033 = vsel %vm1031, %v949, %v973
        %vm1034 = vcmask 162816
        %v1035 = vsel %vm1034, %v1032, %v980
        %v1036 = vsel %vm1034, %v1033, %v982
        %vm1037 = vcmask 244736
        %v1038 = vsel %vm1037, %v1035, %v990
        %v1039 = vsel %vm1037, %v1036, %v992
        %vm1040 = vcmask 326656
        %v1041 = vsel %vm1040, %v1038, %v1002
        %v1042 = vsel %vm1040, %v1039, %v1004
        %vm1043 = vcmask 408576
        %v1044 = vsel %vm1043, %v1041, %v1014
        %v1045 = vsel %vm1043, %v1042, %v1016
        %vm1046 = vcmask 490496
        %v1047 = vsel %vm1046, %v1044, %v1026
        %v1048 = vsel %vm1046, %v1045, %v1028
        %v1051 = vrot.slane %v950, 1
        %v1052 = vrot.slane %v951, 1
        %v1053 = vsel %vm966, %v1051, %v1052
        %v1054 = vrot.slane %v952, 1
        %v1055 = vsel %vm966, %v1052, %v1054
        %1056 = vrot.lane.b32.xlu0 %v1053, 10
        %v1057 = vpop.permute.xlu0 %1056
        %1058 = vrot.lane.b32.xlu0 %v1055, 10
        %v1059 = vpop.permute.xlu0 %1058
        %v1062 = vrot.slane %v950, 2
        %v1063 = vrot.slane %v951, 2
        %v1064 = vsel %vm745, %v1062, %v1063
        %v1065 = vrot.slane %v952, 2
        %v1066 = vsel %vm745, %v1063, %v1065
        %1067 = vrot.lane.b32.xlu0 %v1064, 20
        %v1068 = vpop.permute.xlu0 %1067
        %1069 = vrot.lane.b32.xlu0 %v1066, 20
        %v1070 = vpop.permute.xlu0 %1069
        %v1073 = vrot.slane %v950, 3
        %v1074 = vrot.slane %v951, 3
        %v1075 = vsel %vm985, %v1073, %v1074
        %v1076 = vrot.slane %v952, 3
        %v1077 = vsel %vm985, %v1074, %v1076
        %1078 = vrot.lane.b32.xlu0 %v1075, 30
        %v1079 = vpop.permute.xlu0 %1078
        %1080 = vrot.lane.b32.xlu0 %v1077, 30
        %v1081 = vpop.permute.xlu0 %1080
        %v1084 = vrot.slane %v951, 4
        %v1085 = vsel %vm323, %v999, %v1084
        %v1086 = vrot.slane %v952, 4
        %v1087 = vsel %vm323, %v1084, %v1086
        %1088 = vrot.lane.b32.xlu0 %v1085, 40
        %v1089 = vpop.permute.xlu0 %1088
        %1090 = vrot.lane.b32.xlu0 %v1087, 40
        %v1091 = vpop.permute.xlu0 %1090
        %v1094 = vrot.slane %v951, 5
        %v1095 = vrot.slane %v952, 5
        %v1096 = vsel %vm1007, %v1094, %v1095
        %1097 = vrot.lane.b32.xlu0 %v1094, 50
        %v1098 = vpop.permute.xlu0 %1097
        %1099 = vrot.lane.b32.xlu0 %v1096, 50
        %v1100 = vpop.permute.xlu0 %1099
        %v1103 = vrot.slane %v951, 6
        %v1104 = vrot.slane %v952, 6
        %v1105 = vsel %vm1019, %v1103, %v1104
        %1106 = vrot.lane.b32.xlu0 %v1103, 60
        %v1107 = vpop.permute.xlu0 %1106
        %1108 = vrot.lane.b32.xlu0 %v1105, 60
        %v1109 = vpop.permute.xlu0 %1108
        %v1112 = vsel %vm1031, %v950, %v1057
        %v1113 = vsel %vm1031, %v951, %v1059
        %v1114 = vsel %vm1034, %v1112, %v1068
        %v1115 = vsel %vm1034, %v1113, %v1070
        %v1116 = vsel %vm1037, %v1114, %v1079
        %v1117 = vsel %vm1037, %v1115, %v1081
        %v1118 = vsel %vm1040, %v1116, %v1089
        %v1119 = vsel %vm1040, %v1117, %v1091
        %v1120 = vsel %vm1043, %v1118, %v1098
        %v1121 = vsel %vm1043, %v1119, %v1100
        %v1122 = vsel %vm1046, %v1120, %v1107
        %v1123 = vsel %vm1046, %v1121, %v1109
        %v1126 = vrot.slane %v953, 1
        %v1127 = vsel %vm966, %v1054, %v1126
        %v1128 = vrot.slane %v954, 1
        %v1129 = vsel %vm966, %v1126, %v1128
        %1130 = vrot.lane.b32.xlu0 %v1127, 10
        %v1131 = vpop.permute.xlu0 %1130
        %1132 = vrot.lane.b32.xlu0 %v1129, 10
        %v1133 = vpop.permute.xlu0 %1132
        %1134 = vrot.lane.b32.xlu0 %v1128, 10
        %v1135 = vpop.permute.xlu0 %1134
        %v1139 = vrot.slane %v953, 2
        %v1140 = vrot.slane %v954, 2
        %v1141 = vsel %vm745, %v1139, %v1140
        %1142 = vrot.lane.b32.xlu0 %v1139, 20
        %v1143 = vpop.permute.xlu0 %1142
        %1144 = vrot.lane.b32.xlu0 %v1141, 20
        %v1145 = vpop.permute.xlu0 %1144
        %1146 = vrot.lane.b32.xlu0 %v1140, 20
        %v1147 = vpop.permute.xlu0 %1146
        %v1151 = vrot.slane %v953, 3
        %v1152 = vrot.slane %v954, 3
        %v1153 = vsel %vm985, %v1151, %v1152
        %1154 = vrot.lane.b32.xlu0 %v1151, 30
        %v1155 = vpop.permute.xlu0 %1154
        %1156 = vrot.lane.b32.xlu0 %v1153, 30
        %v1157 = vpop.permute.xlu0 %1156
        %1158 = vrot.lane.b32.xlu0 %v1152, 30
        %v1159 = vpop.permute.xlu0 %1158
        %v1163 = vrot.slane %v953, 4
        %v1164 = vrot.slane %v954, 4
        %v1165 = vsel %vm323, %v1163, %v1164
        %1166 = vrot.lane.b32.xlu0 %v1163, 40
        %v1167 = vpop.permute.xlu0 %1166
        %1168 = vrot.lane.b32.xlu0 %v1165, 40
        %v1169 = vpop.permute.xlu0 %1168
        %1170 = vrot.lane.b32.xlu0 %v1164, 40
        %v1171 = vpop.permute.xlu0 %1170
        %v1175 = vrot.slane %v953, 5
        %v1176 = vrot.slane %v954, 5
        %v1177 = vsel %vm1007, %v1175, %v1176
        %1178 = vrot.lane.b32.xlu0 %v1175, 50
        %v1179 = vpop.permute.xlu0 %1178
        %1180 = vrot.lane.b32.xlu0 %v1177, 50
        %v1181 = vpop.permute.xlu0 %1180
        %1182 = vrot.lane.b32.xlu0 %v1176, 50
        %v1183 = vpop.permute.xlu0 %1182
        %v1188 = vrot.slane %v953, 6
        %v1189 = vrot.slane %v954, 6
        %v1190 = vsel %vm1019, %v1188, %v1189
        %v1191 = vrot.slane %v955, 6
        %v1192 = vsel %vm1019, %v1189, %v1191
        %1193 = vrot.lane.b32.xlu0 %v1188, 60
        %v1194 = vpop.permute.xlu0 %1193
        %1195 = vrot.lane.b32.xlu0 %v1190, 60
        %v1196 = vpop.permute.xlu0 %1195
        %1197 = vrot.lane.b32.xlu0 %v1192, 60
        %v1198 = vpop.permute.xlu0 %1197
        %v1202 = vsel %vm1031, %v952, %v1131
        %v1203 = vsel %vm1031, %v953, %v1133
        %v1204 = vsel %vm1031, %v954, %v1135
        %v1205 = vsel %vm1034, %v1202, %v1143
        %v1206 = vsel %vm1034, %v1203, %v1145
        %v1207 = vsel %vm1034, %v1204, %v1147
        %v1208 = vsel %vm1037, %v1205, %v1155
        %v1209 = vsel %vm1037, %v1206, %v1157
        %v1210 = vsel %vm1037, %v1207, %v1159
        %v1211 = vsel %vm1040, %v1208, %v1167
        %v1212 = vsel %vm1040, %v1209, %v1169
        %v1213 = vsel %vm1040, %v1210, %v1171
        %v1214 = vsel %vm1043, %v1211, %v1179
        %v1215 = vsel %vm1043, %v1212, %v1181
        %v1216 = vsel %vm1043, %v1213, %v1183
        %v1217 = vsel %vm1046, %v1214, %v1194
        %v1218 = vsel %vm1046, %v1215, %v1196
        %v1219 = vsel %vm1046, %v1216, %v1198
        %v1221 = vrot.slane %v955, 1
        %v1222 = vrot.slane %v956, 1
        %v1223 = vsel %vm966, %v1221, %v1222
        %1224 = vrot.lane.b32.xlu0 %v1223, 10
        %v1225 = vpop.permute.xlu0 %1224
        %1226 = vrot.lane.b32.xlu0 %v1222, 10
        %v1227 = vpop.permute.xlu0 %1226
        %v1230 = vrot.slane %v955, 2
        %v1231 = vrot.slane %v956, 2
        %v1232 = vsel %vm745, %v1230, %v1231
        %1233 = vrot.lane.b32.xlu0 %v1232, 20
        %v1234 = vpop.permute.xlu0 %1233
        %1235 = vrot.lane.b32.xlu0 %v1231, 20
        %v1236 = vpop.permute.xlu0 %1235
        %v1240 = vrot.slane %v955, 3
        %v1241 = vrot.slane %v956, 3
        %v1242 = vsel %vm985, %v1240, %v1241
        %v1243 = vrot.slane %v957, 3
        %v1244 = vsel %vm985, %v1241, %v1243
        %1245 = vrot.lane.b32.xlu0 %v1242, 30
        %v1246 = vpop.permute.xlu0 %1245
        %1247 = vrot.lane.b32.xlu0 %v1244, 30
        %v1248 = vpop.permute.xlu0 %1247
        %v1251 = vrot.slane %v955, 4
        %v1252 = vrot.slane %v956, 4
        %v1253 = vsel %vm323, %v1251, %v1252
        %v1254 = vrot.slane %v957, 4
        %v1255 = vsel %vm323, %v1252, %v1254
        %1256 = vrot.lane.b32.xlu0 %v1253, 40
        %v1257 = vpop.permute.xlu0 %1256
        %1258 = vrot.lane.b32.xlu0 %v1255, 40
        %v1259 = vpop.permute.xlu0 %1258
        %v1262 = vrot.slane %v955, 5
        %v1263 = vrot.slane %v956, 5
        %v1264 = vsel %vm1007, %v1262, %v1263
        %v1265 = vrot.slane %v957, 5
        %v1266 = vsel %vm1007, %v1263, %v1265
        %1267 = vrot.lane.b32.xlu0 %v1264, 50
        %v1268 = vpop.permute.xlu0 %1267
        %1269 = vrot.lane.b32.xlu0 %v1266, 50
        %v1270 = vpop.permute.xlu0 %1269
        %v1273 = vrot.slane %v956, 6
        %v1274 = vsel %vm1019, %v1191, %v1273
        %v1275 = vrot.slane %v957, 6
        %v1276 = vsel %vm1019, %v1273, %v1275
        %1277 = vrot.lane.b32.xlu0 %v1274, 60
        %v1278 = vpop.permute.xlu0 %1277
        %1279 = vrot.lane.b32.xlu0 %v1276, 60
        %v1280 = vpop.permute.xlu0 %1279
        %v1283 = vsel %vm1031, %v955, %v1225
        %v1284 = vsel %vm1031, %v956, %v1227
        %v1285 = vsel %vm1034, %v1283, %v1234
        %v1286 = vsel %vm1034, %v1284, %v1236
        %v1287 = vsel %vm1037, %v1285, %v1246
        %v1288 = vsel %vm1037, %v1286, %v1248
        %v1289 = vsel %vm1040, %v1287, %v1257
        %v1290 = vsel %vm1040, %v1288, %v1259
        %v1291 = vsel %vm1043, %v1289, %v1268
        %v1292 = vsel %vm1043, %v1290, %v1270
        %v1293 = vsel %vm1046, %v1291, %v1278
        %v1294 = vsel %vm1046, %v1292, %v1280
        %v1297 = vrot.slane %v1122, 6
        %v1298 = vrot.slane %v1123, 6
        %v1299 = vsel %vm1019, %v1297, %v1298
        %v1305 = vrot.slane %v1217, 4
        %v1306 = vrot.slane %v1218, 4
        %v1307 = vsel %vm323, %v1305, %v1306
        %v1308 = vrot.slane %v1219, 4
        %v1309 = vsel %vm323, %v1306, %v1308
        %v1314 = vrot.slane %v1293, 2
        %v1315 = vrot.slane %v1294, 2
        %v1316 = vsel %vm745, %v1314, %v1315
        %v1318 = vsel %vm985, %v1048, %v1297
        %v1319 = vsel %vm1019, %v1298, %v1307
        %v1320 = vsel %vm966, %v1309, %v1314
        %v1321 = vld [vmem:[%s3] sm:$0xff]
        %v1322 = vld [vmem:[%s3 + $0x8] sm:$0xff]
        %v1323 = vld [vmem:[%s3 + $0x10] sm:$0xff]
        %v1324 = vld [vmem:[%s3 + $0x18] sm:$0xff]
        %v1325 = vld [vmem:[%s3 + $0x20] sm:$0xff]
        %v1326 = vld [vmem:[%s3 + $0x28] sm:$0xff]
        %v1327 = vld [vmem:[%s3 + $0x30] sm:$0xff]
        %v1328 = vld [vmem:[%s3 + $0x38] sm:$0xff]
        %v1329 = vld [vmem:[%s3 + $0x40] sm:$0x3f]
        %vm1330 = vcmask 572416
        %v1332 = vsel %vm1330, %v1047, 0
        %v1335 = vsel %vm1330, %v1318, 0
        %v1337 = vsel %vm1330, %v1299, 0
        %v1340 = vsel %vm1330, %v1319, 0
        %v1343 = vsel %vm1330, %v1320, 0
        %v1345 = vsel %vm1330, %v1316, 0
        %v1347 = vsel %vm1330, %v1315, 0
        %v1350 = vsel %vm745, %v1329, 0
        %1352 = vmatprep.subr.mxu0 0.0
        %1353 = vmatpush1.msra.mxu0 0.0
        %1354 = vmatprep.subr.mxu0 0.0
        %1355 = vmatpush1.msra.mxu0 0.0
        %1356 = vmatprep.subr.mxu0 0.0
        %1357 = vmatpush1.msra.mxu0 0.0
        %1358 = vmatprep.subr.mxu0 0.0
        %1359 = vmatpush1.msra.mxu0 0.0
        %1360 = vmatprep.subr.mxu0 0.0
        %1361 = vmatpush1.msra.mxu0 0.0
        %1362 = vmatprep.subr.mxu0 0.0
        %1363 = vmatpush1.msra.mxu0 0.0
        %1364 = vmatprep.subr.mxu0 0.0
        %1365 = vmatpush1.msra.mxu0 0.0
        %1366 = vmatprep.subr.mxu0 0.0
        %1367 = vmatpush1.msra.mxu0 %v1350
        %1368 = vmatprep.subr.mxu0 0.0
        %1369 = vmatpush1.msra.mxu0 %v1328
        %1370 = vmatprep.subr.mxu0 0.0
        %1371 = vmatpush1.msra.mxu0 %v1327
        %1372 = vmatprep.subr.mxu0 0.0
        %1373 = vmatpush1.msra.mxu0 %v1326
        %1374 = vmatprep.subr.mxu0 0.0
        %1375 = vmatpush1.msra.mxu0 %v1325
        %1376 = vmatprep.subr.mxu0 0.0
        %1377 = vmatpush1.msra.mxu0 %v1324
        %1378 = vmatprep.subr.mxu0 0.0
        %1379 = vmatpush1.msra.mxu0 %v1323
        %1380 = vmatprep.subr.mxu0 0.0
        %1381 = vmatpush1.msra.mxu0 %v1322
        %1382 = vmatprep.subr.mxu0 0.0
        %1383 = vmatpush1.msra.mxu0 %v1321
        %1384 = vmatprep.subr.mxu0 0.0
        %1385 = vmatpush2.msra.mxu0 0.0
        %1386 = vmatprep.subr.mxu0 0.0
        %1387 = vmatpush2.msra.mxu0 0.0
        %1388 = vmatprep.subr.mxu0 0.0
        %1389 = vmatpush2.msra.mxu0 0.0
        %1390 = vmatprep.subr.mxu0 0.0
        %1391 = vmatpush2.msra.mxu0 0.0
        %1392 = vmatprep.subr.mxu0 0.0
        %1393 = vmatpush2.msra.mxu0 0.0
        %1394 = vmatprep.subr.mxu0 0.0
        %1395 = vmatpush2.msra.mxu0 0.0
        %1396 = vmatprep.subr.mxu0 0.0
        %1397 = vmatpush2.msra.mxu0 0.0
        %1398 = vmatprep.subr.mxu0 0.0
        %1399 = vmatpush2.msra.mxu0 0.0
        %1400 = vmatprep.subr.mxu0 0.0
        %1401 = vmatpush2.msra.mxu0 0.0
        %1402 = vmatprep.subr.mxu0 0.0
        %1403 = vmatpush2.msra.mxu0 0.0
        %1404 = vmatprep.subr.mxu0 0.0
        %1405 = vmatpush2.msra.mxu0 0.0
        %1406 = vmatprep.subr.mxu0 0.0
        %1407 = vmatpush2.msra.mxu0 0.0
        %1408 = vmatprep.subr.mxu0 0.0
        %1409 = vmatpush2.msra.mxu0 0.0
        %1410 = vmatprep.subr.mxu0 0.0
        %1411 = vmatpush2.msra.mxu0 0.0
        %1412 = vmatprep.subr.mxu0 0.0
        %1413 = vmatpush2.msra.mxu0 0.0
        %1414 = vmatprep.subr.mxu0 0.0
        %1415 = vmatpush2.msra.mxu0 0.0
        %1416 = vmatprep.mubr.f32.mxu0 0.0
        %1417 = vmatmul.mubr.f32.gmra.mxu0 %v1332
        %v1418 = vpop.f32.mrf.mxu0
        %v1419 = vadd.f32 0.0, %v1418
        %v1420 = vpop.f32.mrf.mxu0
        %1421 = vmatprep.mubr.f32.mxu0 0.0
        %1422 = vmatmul.mubr.f32.gmra.mxu0 %v1335
        %v1423 = vpop.f32.mrf.mxu0
        %v1424 = vadd.f32 0.0, %v1423
        %v1425 = vpop.f32.mrf.mxu0
        %1426 = vmatprep.mubr.f32.mxu0 0.0
        %1427 = vmatmul.mubr.f32.gmra.mxu0 %v1337
        %v1428 = vpop.f32.mrf.mxu0
        %v1429 = vadd.f32 0.0, %v1428
        %v1430 = vpop.f32.mrf.mxu0
        %1431 = vmatprep.mubr.f32.mxu0 0.0
        %1432 = vmatmul.mubr.f32.gmra.mxu0 %v1340
        %v1433 = vpop.f32.mrf.mxu0
        %v1434 = vadd.f32 0.0, %v1433
        %v1435 = vpop.f32.mrf.mxu0
        %1436 = vmatprep.mubr.f32.mxu0 0.0
        %1437 = vmatmul.mubr.f32.gmra.mxu0 %v1343
        %v1438 = vpop.f32.mrf.mxu0
        %v1439 = vadd.f32 0.0, %v1438
        %v1440 = vpop.f32.mrf.mxu0
        %1441 = vmatprep.mubr.f32.mxu0 0.0
        %1442 = vmatmul.mubr.f32.gmra.mxu0 %v1345
        %v1443 = vpop.f32.mrf.mxu0
        %v1444 = vadd.f32 0.0, %v1443
        %v1445 = vpop.f32.mrf.mxu0
        %1446 = vmatprep.mubr.f32.mxu0 0.0
        %1447 = vmatmul.mubr.f32.gmra.mxu0 %v1347
        %v1448 = vpop.f32.mrf.mxu0
        %v1449 = vadd.f32 0.0, %v1448
        %v1450 = vpop.f32.mrf.mxu0
        %1451 = vdwg.mxu0
        %v1452 = vld [vmem:[%s5] sm:$0x1]
        %v1453 = vlaneseq
        %v1454 = vshrl.u32 %v1453, 7
        %v1455 = vsub.s32 0, %v1454
        %v1456 = vrot.slane %v1452, %v1455
        %v1457 = vmul.f32 %v1419, %v1456
        %v1458 = vmul.f32 %v1424, %v1456
        %v1459 = vmul.f32 %v1429, %v1456
        %v1460 = vmul.f32 %v1434, %v1456
        %v1461 = vmul.f32 %v1439, %v1456
        %v1462 = vmul.f32 %v1444, %v1456
        %v1463 = vmul.f32 %v1449, %v1456
        %v1464 = vld [vmem:[%s5 + $0x1] sm:$0x1]
        %v1465 = vlaneseq
        %v1466 = vshrl.u32 %v1465, 7
        %v1467 = vsub.s32 0, %v1466
        %v1468 = vrot.slane %v1464, %v1467
        %v1469 = vadd.f32 %v1457, %v1468
        %v1470 = vadd.f32 %v1458, %v1468
        %v1471 = vadd.f32 %v1459, %v1468
        %v1472 = vadd.f32 %v1460, %v1468
        %v1473 = vadd.f32 %v1461, %v1468
        %v1474 = vadd.f32 %v1462, %v1468
        %v1475 = vadd.f32 %v1463, %v1468
        %v1478 = vrot.slane %v1469, 1
        %v1479 = vrot.slane %v1470, 1
        %v1480 = vsel %vm966, %v1478, %v1479
        %1481 = vrot.lane.b32.xlu0 %v1480, 64
        %v1482 = vpop.permute.xlu0 %1481
        %1483 = vrot.lane.b32.xlu0 %v1479, 64
        %v1484 = vpop.permute.xlu0 %1483
        %v1487 = vrot.slane %v1469, 2
        %v1488 = vrot.slane %v1470, 2
        %v1489 = vsel %vm745, %v1487, %v1488
        %v1492 = vrot.slane %v1469, 3
        %v1493 = vrot.slane %v1470, 3
        %v1494 = vsel %vm985, %v1492, %v1493
        %1495 = vrot.lane.b32.xlu0 %v1494, 64
        %v1496 = vpop.permute.xlu0 %1495
        %1497 = vrot.lane.b32.xlu0 %v1493, 64
        %v1498 = vpop.permute.xlu0 %1497
        %v1501 = vrot.slane %v1469, 4
        %v1502 = vrot.slane %v1470, 4
        %v1503 = vsel %vm323, %v1501, %v1502
        %vm1505 = vcmask 523264
        %v1506 = vsel %vm1505, %v1469, %v1482
        %v1507 = vsel %vm1505, %v1470, %v1484
        %v1508 = vsel %vm1505, %v1489, %v1496
        %v1509 = vsel %vm1505, %v1488, %v1498
        %v1511 = vrot.slane %v1471, 1
        %v1512 = vsel %vm966, %v1479, %v1511
        %1513 = vrot.lane.b32.xlu0 %v1512, 64
        %v1514 = vpop.permute.xlu0 %1513
        %1515 = vrot.lane.b32.xlu0 %v1511, 64
        %v1516 = vpop.permute.xlu0 %1515
        %v1519 = vrot.slane %v1471, 2
        %v1520 = vsel %vm745, %v1488, %v1519
        %v1524 = vrot.slane %v1471, 3
        %v1525 = vrot.slane %v1472, 3
        %v1526 = vsel %vm985, %v1524, %v1525
        %1527 = vrot.lane.b32.xlu0 %v1524, 64
        %v1528 = vpop.permute.xlu0 %1527
        %1529 = vrot.lane.b32.xlu0 %v1526, 64
        %v1530 = vpop.permute.xlu0 %1529
        %v1533 = vrot.slane %v1471, 4
        %v1534 = vrot.slane %v1472, 4
        %v1535 = vsel %vm323, %v1533, %v1534
        %v1536 = vsel %vm1505, %v1470, %v1514
        %v1537 = vsel %vm1505, %v1471, %v1516
        %v1538 = vsel %vm1505, %v1520, %v1528
        %v1539 = vsel %vm1505, %v1519, %v1530
        %v1541 = vrot.slane %v1472, 1
        %v1542 = vrot.slane %v1473, 1
        %v1543 = vsel %vm966, %v1541, %v1542
        %1544 = vrot.lane.b32.xlu0 %v1543, 64
        %v1545 = vpop.permute.xlu0 %1544
        %1546 = vrot.lane.b32.xlu0 %v1542, 64
        %v1547 = vpop.permute.xlu0 %1546
        %v1550 = vrot.slane %v1472, 2
        %v1551 = vrot.slane %v1473, 2
        %v1552 = vsel %vm745, %v1550, %v1551
        %v1555 = vrot.slane %v1473, 3
        %v1556 = vsel %vm985, %v1525, %v1555
        %1557 = vrot.lane.b32.xlu0 %v1556, 64
        %v1558 = vpop.permute.xlu0 %1557
        %1559 = vrot.lane.b32.xlu0 %v1555, 64
        %v1560 = vpop.permute.xlu0 %1559
        %v1563 = vrot.slane %v1473, 4
        %v1564 = vsel %vm323, %v1534, %v1563
        %v1567 = vsel %vm1505, %v1472, %v1545
        %v1568 = vsel %vm1505, %v1473, %v1547
        %v1569 = vsel %vm1505, %v1552, %v1558
        %v1570 = vsel %vm1505, %v1551, %v1560
        %v1573 = vrot.slane %v1474, 1
        %v1574 = vrot.slane %v1475, 1
        %v1575 = vsel %vm966, %v1573, %v1574
        %1576 = vrot.lane.b32.xlu0 %v1573, 64
        %v1577 = vpop.permute.xlu0 %1576
        %1578 = vrot.lane.b32.xlu0 %v1575, 64
        %v1579 = vpop.permute.xlu0 %1578
        %v1582 = vrot.slane %v1474, 2
        %v1583 = vrot.slane %v1475, 2
        %v1584 = vsel %vm745, %v1582, %v1583
        %v1587 = vrot.slane %v1474, 3
        %v1588 = vrot.slane %v1475, 3
        %v1589 = vsel %vm985, %v1587, %v1588
        %1590 = vrot.lane.b32.xlu0 %v1587, 64
        %v1591 = vpop.permute.xlu0 %1590
        %1592 = vrot.lane.b32.xlu0 %v1589, 64
        %v1593 = vpop.permute.xlu0 %1592
        %v1596 = vrot.slane %v1474, 4
        %v1597 = vrot.slane %v1475, 4
        %v1598 = vsel %vm323, %v1596, %v1597
        %v1599 = vsel %vm1505, %v1473, %v1577
        %v1600 = vsel %vm1505, %v1474, %v1579
        %v1601 = vsel %vm1505, %v1582, %v1591
        %v1602 = vsel %vm1505, %v1584, %v1593
        %v1607 = vrot.slane %v1536, 4
        %v1608 = vrot.slane %v1537, 4
        %v1609 = vsel %vm323, %v1607, %v1608
        %v1610 = vrot.slane %v1538, 4
        %v1611 = vrot.slane %v1539, 4
        %v1612 = vsel %vm323, %v1610, %v1611
        %v1613 = vrot.slane %v1533, 4
        %v1614 = vrot.slane %v1535, 4
        %v1615 = vsel %vm323, %v1613, %v1614
        %v1626 = vrot.slane %v1599, 4
        %v1627 = vrot.slane %v1600, 4
        %v1628 = vsel %vm323, %v1626, %v1627
        %v1629 = vrot.slane %v1601, 4
        %v1630 = vrot.slane %v1602, 4
        %v1631 = vsel %vm323, %v1629, %v1630
        %v1632 = vrot.slane %v1596, 4
        %v1633 = vrot.slane %v1598, 4
        %v1634 = vsel %vm323, %v1632, %v1633
        %vm1640 = vcmask 1040384
        %v1641 = vsel %vm1640, %v1507, %v1609
        %v1642 = vsel %vm1640, %v1509, %v1612
        %v1643 = vsel %vm1640, %v1502, %v1615
        %v1644 = vsel %vm1019, %v1608, %v1567
        %v1645 = vsel %vm1019, %v1611, %v1569
        %v1646 = vsel %vm1019, %v1614, %v1564
        %v1647 = vsel %vm1007, %v1568, %v1628
        %v1648 = vsel %vm1007, %v1570, %v1631
        %v1649 = vsel %vm1007, %v1563, %v1634
        %v1650 = vld [vmem:[%s4] sm:$0xff]
        %v1651 = vld [vmem:[%s4 + $0x8] sm:$0xff]
        %v1652 = vld [vmem:[%s4 + $0x10] sm:$0xff]
        %v1653 = vld [vmem:[%s4 + $0x18] sm:$0xff]
        %v1654 = vld [vmem:[%s4 + $0x20] sm:$0xff]
        %v1655 = vld [vmem:[%s4 + $0x28] sm:$0xff]
        %v1656 = vld [vmem:[%s4 + $0x30] sm:$0xff]
        %v1657 = vld [vmem:[%s4 + $0x38] sm:$0xff]
        %v1658 = vld [vmem:[%s4 + $0x40] sm:$0xff]
        %v1659 = vld [vmem:[%s4 + $0x48] sm:$0xff]
        %v1660 = vld [vmem:[%s4 + $0x50] sm:$0xff]
        %v1661 = vld [vmem:[%s4 + $0x58] sm:$0xff]
        %v1662 = vld [vmem:[%s4 + $0x60] sm:$0xff]
        %v1663 = vld [vmem:[%s4 + $0x68] sm:$0xff]
        %v1664 = vld [vmem:[%s4 + $0x70] sm:$0xff]
        %v1665 = vld [vmem:[%s4 + $0x78] sm:$0xff]
        %v1666 = vld [vmem:[%s4 + $0x80] sm:$0xff]
        %v1667 = vld [vmem:[%s4 + $0x88] sm:$0xff]
        %v1668 = vld [vmem:[%s4 + $0x90] sm:$0xff]
        %v1669 = vld [vmem:[%s4 + $0x98] sm:$0xff]
        %v1670 = vld [vmem:[%s4 + $0xa0] sm:$0xff]
        %v1671 = vld [vmem:[%s4 + $0xa8] sm:$0xff]
        %v1672 = vld [vmem:[%s4 + $0xb0] sm:$0xff]
        %v1673 = vld [vmem:[%s4 + $0xb8] sm:$0xff]
        %v1674 = vld [vmem:[%s4 + $0xc0] sm:$0xff]
        %v1675 = vld [vmem:[%s4 + $0xc8] sm:$0xff]
        %v1676 = vld [vmem:[%s4 + $0xd0] sm:$0xff]
        %v1677 = vld [vmem:[%s4 + $0xd8] sm:$0xff]
        %v1678 = vld [vmem:[%s4 + $0xe0] sm:$0xff]
        %v1679 = vld [vmem:[%s4 + $0xe8] sm:$0xff]
        %v1680 = vld [vmem:[%s4 + $0xf0] sm:$0xff]
        %v1681 = vld [vmem:[%s4 + $0xf8] sm:$0xff]
        %v1682 = vld [vmem:[%s4 + $0x100] sm:$0xff]
        %v1683 = vld [vmem:[%s4 + $0x108] sm:$0xff]
        %v1684 = vld [vmem:[%s4 + $0x110] sm:$0xff]
        %v1685 = vld [vmem:[%s4 + $0x118] sm:$0xff]
        %v1686 = vld [vmem:[%s4 + $0x120] sm:$0xff]
        %v1687 = vld [vmem:[%s4 + $0x128] sm:$0xff]
        %v1688 = vld [vmem:[%s4 + $0x130] sm:$0xff]
        %v1689 = vld [vmem:[%s4 + $0x138] sm:$0xff]
        %v1690 = vsel %vm1505, %v1503, 0
        %v1693 = vsel %vm1505, %v1643, 0
        %v1696 = vsel %vm1505, %v1646, 0
        %v1699 = vsel %vm1505, %v1649, 0
        %v1701 = vsel %vm1505, %v1633, 0
        %1703 = vmatprep.subr.mxu0 0.0
        %1704 = vmatpush1.msra.mxu0 %v1665
        %1705 = vmatprep.subr.mxu0 0.0
        %1706 = vmatpush1.msra.mxu0 %v1664
        %1707 = vmatprep.subr.mxu0 0.0
        %1708 = vmatpush1.msra.mxu0 %v1663
        %1709 = vmatprep.subr.mxu0 0.0
        %1710 = vmatpush1.msra.mxu0 %v1662
        %1711 = vmatprep.subr.mxu0 0.0
        %1712 = vmatpush1.msra.mxu0 %v1661
        %1713 = vmatprep.subr.mxu0 0.0
        %1714 = vmatpush1.msra.mxu0 %v1660
        %1715 = vmatprep.subr.mxu0 0.0
        %1716 = vmatpush1.msra.mxu0 %v1659
        %1717 = vmatprep.subr.mxu0 0.0
        %1718 = vmatpush1.msra.mxu0 %v1658
        %1719 = vmatprep.subr.mxu0 0.0
        %1720 = vmatpush1.msra.mxu0 %v1657
        %1721 = vmatprep.subr.mxu0 0.0
        %1722 = vmatpush1.msra.mxu0 %v1656
        %1723 = vmatprep.subr.mxu0 0.0
        %1724 = vmatpush1.msra.mxu0 %v1655
        %1725 = vmatprep.subr.mxu0 0.0
        %1726 = vmatpush1.msra.mxu0 %v1654
        %1727 = vmatprep.subr.mxu0 0.0
        %1728 = vmatpush1.msra.mxu0 %v1653
        %1729 = vmatprep.subr.mxu0 0.0
        %1730 = vmatpush1.msra.mxu0 %v1652
        %1731 = vmatprep.subr.mxu0 0.0
        %1732 = vmatpush1.msra.mxu0 %v1651
        %1733 = vmatprep.subr.mxu0 0.0
        %1734 = vmatpush1.msra.mxu0 %v1650
        %1735 = vmatprep.subr.mxu0 0.0
        %1736 = vmatpush2.msra.mxu0 %v1681
        %1737 = vmatprep.subr.mxu0 0.0
        %1738 = vmatpush2.msra.mxu0 %v1680
        %1739 = vmatprep.subr.mxu0 0.0
        %1740 = vmatpush2.msra.mxu0 %v1679
        %1741 = vmatprep.subr.mxu0 0.0
        %1742 = vmatpush2.msra.mxu0 %v1678
        %1743 = vmatprep.subr.mxu0 0.0
        %1744 = vmatpush2.msra.mxu0 %v1677
        %1745 = vmatprep.subr.mxu0 0.0
        %1746 = vmatpush2.msra.mxu0 %v1676
        %1747 = vmatprep.subr.mxu0 0.0
        %1748 = vmatpush2.msra.mxu0 %v1675
        %1749 = vmatprep.subr.mxu0 0.0
        %1750 = vmatpush2.msra.mxu0 %v1674
        %1751 = vmatprep.subr.mxu0 0.0
        %1752 = vmatpush2.msra.mxu0 %v1673
        %1753 = vmatprep.subr.mxu0 0.0
        %1754 = vmatpush2.msra.mxu0 %v1672
        %1755 = vmatprep.subr.mxu0 0.0
        %1756 = vmatpush2.msra.mxu0 %v1671
        %1757 = vmatprep.subr.mxu0 0.0
        %1758 = vmatpush2.msra.mxu0 %v1670
        %1759 = vmatprep.subr.mxu0 0.0
        %1760 = vmatpush2.msra.mxu0 %v1669
        %1761 = vmatprep.subr.mxu0 0.0
        %1762 = vmatpush2.msra.mxu0 %v1668
        %1763 = vmatprep.subr.mxu0 0.0
        %1764 = vmatpush2.msra.mxu0 %v1667
        %1765 = vmatprep.subr.mxu0 0.0
        %1766 = vmatpush2.msra.mxu0 %v1666
        %1767 = vmatprep.mubr.f32.mxu0 %v1508
        %1768 = vmatmul.mubr.f32.gmra.mxu0 %v1506
        %v1769 = vpop.f32.mrf.mxu0
        %v1770 = vadd.f32 0.0, %v1769
        %v1771 = vpop.f32.mrf.mxu0
        %1772 = vmatprep.mubr.f32.mxu0 %v1642
        %1773 = vmatmul.mubr.f32.gmra.mxu0 %v1641
        %v1774 = vpop.f32.mrf.mxu0
        %v1775 = vadd.f32 0.0, %v1774
        %v1776 = vpop.f32.mrf.mxu0
        %1777 = vmatprep.mubr.f32.mxu0 %v1645
        %1778 = vmatmul.mubr.f32.gmra.mxu0 %v1644
        %v1779 = vpop.f32.mrf.mxu0
        %v1780 = vadd.f32 0.0, %v1779
        %v1781 = vpop.f32.mrf.mxu0
        %1782 = vmatprep.mubr.f32.mxu0 %v1648
        %1783 = vmatmul.mubr.f32.gmra.mxu0 %v1647
        %v1784 = vpop.f32.mrf.mxu0
        %v1785 = vadd.f32 0.0, %v1784
        %v1786 = vpop.f32.mrf.mxu0
        %1787 = vmatprep.mubr.f32.mxu0 %v1630
        %1788 = vmatmul.mubr.f32.gmra.mxu0 %v1627
        %v1789 = vpop.f32.mrf.mxu0
        %v1790 = vadd.f32 0.0, %v1789
        %v1791 = vpop.f32.mrf.mxu0
        %1792 = vdwg.mxu0
        %1793 = vmatprep.subr.mxu0 0.0
        %1794 = vmatpush1.msra.mxu0 0.0
        %1795 = vmatprep.subr.mxu0 0.0
        %1796 = vmatpush1.msra.mxu0 0.0
        %1797 = vmatprep.subr.mxu0 0.0
        %1798 = vmatpush1.msra.mxu0 0.0
        %1799 = vmatprep.subr.mxu0 0.0
        %1800 = vmatpush1.msra.mxu0 0.0
        %1801 = vmatprep.subr.mxu0 0.0
        %1802 = vmatpush1.msra.mxu0 0.0
        %1803 = vmatprep.subr.mxu0 0.0
        %1804 = vmatpush1.msra.mxu0 0.0
        %1805 = vmatprep.subr.mxu0 0.0
        %1806 = vmatpush1.msra.mxu0 0.0
        %1807 = vmatprep.subr.mxu0 0.0
        %1808 = vmatpush1.msra.mxu0 0.0
        %1809 = vmatprep.subr.mxu0 0.0
        %1810 = vmatpush1.msra.mxu0 %v1689
        %1811 = vmatprep.subr.mxu0 0.0
        %1812 = vmatpush1.msra.mxu0 %v1688
        %1813 = vmatprep.subr.mxu0 0.0
        %1814 = vmatpush1.msra.mxu0 %v1687
        %1815 = vmatprep.subr.mxu0 0.0
        %1816 = vmatpush1.msra.mxu0 %v1686
        %1817 = vmatprep.subr.mxu0 0.0
        %1818 = vmatpush1.msra.mxu0 %v1685
        %1819 = vmatprep.subr.mxu0 0.0
        %1820 = vmatpush1.msra.mxu0 %v1684
        %1821 = vmatprep.subr.mxu0 0.0
        %1822 = vmatpush1.msra.mxu0 %v1683
        %1823 = vmatprep.subr.mxu0 0.0
        %1824 = vmatpush1.msra.mxu0 %v1682
        %1825 = vmatprep.subr.mxu0 0.0
        %1826 = vmatpush2.msra.mxu0 0.0
        %1827 = vmatprep.subr.mxu0 0.0
        %1828 = vmatpush2.msra.mxu0 0.0
        %1829 = vmatprep.subr.mxu0 0.0
        %1830 = vmatpush2.msra.mxu0 0.0
        %1831 = vmatprep.subr.mxu0 0.0
        %1832 = vmatpush2.msra.mxu0 0.0
        %1833 = vmatprep.subr.mxu0 0.0
        %1834 = vmatpush2.msra.mxu0 0.0
        %1835 = vmatprep.subr.mxu0 0.0
        %1836 = vmatpush2.msra.mxu0 0.0
        %1837 = vmatprep.subr.mxu0 0.0
        %1838 = vmatpush2.msra.mxu0 0.0
        %1839 = vmatprep.subr.mxu0 0.0
        %1840 = vmatpush2.msra.mxu0 0.0
        %1841 = vmatprep.subr.mxu0 0.0
        %1842 = vmatpush2.msra.mxu0 0.0
        %1843 = vmatprep.subr.mxu0 0.0
        %1844 = vmatpush2.msra.mxu0 0.0
        %1845 = vmatprep.subr.mxu0 0.0
        %1846 = vmatpush2.msra.mxu0 0.0
        %1847 = vmatprep.subr.mxu0 0.0
        %1848 = vmatpush2.msra.mxu0 0.0
        %1849 = vmatprep.subr.mxu0 0.0
        %1850 = vmatpush2.msra.mxu0 0.0
        %1851 = vmatprep.subr.mxu0 0.0
        %1852 = vmatpush2.msra.mxu0 0.0
        %1853 = vmatprep.subr.mxu0 0.0
        %1854 = vmatpush2.msra.mxu0 0.0
        %1855 = vmatprep.subr.mxu0 0.0
        %1856 = vmatpush2.msra.mxu0 0.0
        %1857 = vmatprep.mubr.f32.mxu0 0.0
        %1858 = vmatmul.mubr.f32.gmra.mxu0 %v1690
        %v1859 = vpop.f32.mrf.mxu0
        %v1860 = vadd.f32 %v1770, %v1859
        %v1861 = vpop.f32.mrf.mxu0
        %1862 = vmatprep.mubr.f32.mxu0 0.0
        %1863 = vmatmul.mubr.f32.gmra.mxu0 %v1693
        %v1864 = vpop.f32.mrf.mxu0
        %v1865 = vadd.f32 %v1775, %v1864
        %v1866 = vpop.f32.mrf.mxu0
        %1867 = vmatprep.mubr.f32.mxu0 0.0
        %1868 = vmatmul.mubr.f32.gmra.mxu0 %v1696
        %v1869 = vpop.f32.mrf.mxu0
        %v1870 = vadd.f32 %v1780, %v1869
        %v1871 = vpop.f32.mrf.mxu0
        %1872 = vmatprep.mubr.f32.mxu0 0.0
        %1873 = vmatmul.mubr.f32.gmra.mxu0 %v1699
        %v1874 = vpop.f32.mrf.mxu0
        %v1875 = vadd.f32 %v1785, %v1874
        %v1876 = vpop.f32.mrf.mxu0
        %1877 = vmatprep.mubr.f32.mxu0 0.0
        %1878 = vmatmul.mubr.f32.gmra.mxu0 %v1701
        %v1879 = vpop.f32.mrf.mxu0
        %v1880 = vadd.f32 %v1790, %v1879
        %v1881 = vpop.f32.mrf.mxu0
        %1882 = vdwg.mxu0
        %v1883 = vld [vmem:[%s5 + $0x2] sm:$0x1]
        %v1884 = vlaneseq
        %v1885 = vshrl.u32 %v1884, 7
        %v1886 = vsub.s32 0, %v1885
        %v1887 = vrot.slane %v1883, %v1886
        %v1888 = vmul.f32 %v1860, %v1887
        %v1889 = vmul.f32 %v1865, %v1887
        %v1890 = vmul.f32 %v1870, %v1887
        %v1891 = vmul.f32 %v1875, %v1887
        %v1892 = vmul.f32 %v1880, %v1887
        %v1893 = vld [vmem:[%s5 + $0x3] sm:$0x1]
        %v1894 = vlaneseq
        %v1895 = vshrl.u32 %v1894, 7
        %v1896 = vsub.s32 0, %v1895
        %v1897 = vrot.slane %v1893, %v1896
        %v1898 = vadd.f32 %v1888, %v1897
        %v1899 = vadd.f32 %v1889, %v1897
        %v1900 = vadd.f32 %v1890, %v1897
        %v1901 = vadd.f32 %v1891, %v1897
        %v1902 = vadd.f32 %v1892, %v1897
        %v1905 = vrot.slane %v1899, 1
        %v1906 = vrot.slane %v1900, 1
        %v1907 = vsel %vm966, %v1905, %v1906
        %1908 = vrot.lane.b32.xlu0 %v1907, 64
        %v1909 = vpop.permute.xlu0 %1908
        %1910 = vrot.lane.b32.xlu0 %v1906, 64
        %v1911 = vpop.permute.xlu0 %1910
        %v1915 = vrot.slane %v1900, 2
        %v1916 = vrot.slane %v1901, 2
        %v1917 = vsel %vm745, %v1915, %v1916
        %v1921 = vrot.slane %v1901, 3
        %v1922 = vrot.slane %v1902, 3
        %v1923 = vsel %vm985, %v1921, %v1922
        %1924 = vrot.lane.b32.xlu0 %v1923, 64
        %v1925 = vpop.permute.xlu0 %1924
        %1926 = vrot.lane.b32.xlu0 %v1922, 64
        %v1927 = vpop.permute.xlu0 %1926
        %v1930 = vsel %vm1505, %v1898, %v1909
        %v1931 = vsel %vm1505, %v1899, %v1911
        %v1932 = vsel %vm1505, %v1917, %v1925
        %v1933 = vsel %vm1505, %v1916, %v1927
        %1934 = vst [vmem:[%s274] sm:$0xff] %v1930
        %1935 = vst [vmem:[%s274 + $0x8] sm:$0xff] %v1932
        %1936 = vst [vmem:[%s274 + $0x10] sm:$0x1] %v1931
        %1937 = vst [vmem:[%s274 + $0x18] sm:$0x1] %v1933
        %s1938 = sand.u32 %s181, 1
        %s1939 = scalar_lea.sflag [#allocation3], %s1938
        %s1940 = sand.u32 %s181, 1
        %s1941 = smul.addr %s1940, 32
        %s1942 = scalar_lea.vmem [#allocation2], %s1941
        // Predicated region
        $region49: #{tpu_custom_call.1} parent=47 // pred_check
          %p1943 = pneg %p191
        $region50: #{tpu_custom_call.1} parent=47 // pred_check_branch
          %1945 = sbr.rel (%p1943) target = $region52
        $region51: #{tpu_custom_call.1} parent=47 // pred_region
          %s1946 = smul.u32 2, %s21
          %s1948 = ssub.s32 512, 512
          %1949 = vsyncadd %s1939, %s1948
          %s1950 = smul.addr %s1946, 128
          %s1951 = scalar_lea.hbm %s7, %s1950
          %s1952 = sshll.u32 %s1942, 4
          %s1953 = int_to_ptr.vmem [resolvable:$true] %s1952
          %1958 = dma.vmem_to_hbm [thread:$0]  %s1953, 512, %s1951, %s1939, 256, 512, 16
        $region52: #{tpu_custom_call.1} parent=47 // pred_fallthru
          _
      $region48: #{tpu_custom_call.1} parent=5 // pred_fallthru
        _
      %p1959 = scmp.le.s32.totalorder 2, %s16
      // Predicated region
      $region53: #{tpu_custom_call.1} parent=5 // pred_check
        %p1960 = pneg %p1959
      $region54: #{tpu_custom_call.1} parent=5 // pred_check_branch
        %1962 = sbr.rel (%p1960) target = $region56
      $region55: #{tpu_custom_call.1} parent=5 // pred_region
        %s1963 = ssub.s32 %s16, 2
        // Predicated region
        $region57: #{tpu_custom_call.1} parent=55 // pred_check
          %p1964 = pneg %p197
        $region58: #{tpu_custom_call.1} parent=55 // pred_check_branch
          %1966 = sbr.rel (%p1964) target = $region60
        $region59: #{tpu_custom_call.1} parent=55 // pred_region
          %s1967 = sand.u32 %s182, 1
          %s1968 = scalar_lea.sflag [#allocation3], %s1967
          %s1969 = sand.u32 %s182, 1
          %s1970 = smul.addr %s1969, 32
          %s1971 = scalar_lea.vmem [#allocation2], %s1970
          %1972 = dma.done %s1968, 512
        $region60: #{tpu_custom_call.1} parent=55 // pred_fallthru
          _
      $region56: #{tpu_custom_call.1} parent=5 // pred_fallthru
        _
    $region6: #{tpu_custom_call.1} parent=1 // loop_footer
      %s20 = sadd.s32 1, %s16
    $region7: #{tpu_custom_call.1} parent=1 // loop_footer_branch
      %15 = sbr.rel target = $region3
    $region8: #{tpu_custom_call.1} parent=1 // loop_exit
      _
    %1973 = vsyncpa [#allocation3], 1
    %s1974 = scalar_lea.sflag [#allocation3], 1
    %1975 = vsyncpa %s1974, 1

</llo_original>
